<compile_context>
chip_gen: v7x
topology: tpu7x:2x2x1
jax: 0.10.0
libtpu: 0.0.40
codegen_flags: <defaults>
</compile_context>

<pallas_src>
import jax
import jax.numpy as jnp
import numpy as np
from jax import lax
from jax.experimental import pallas as pl
from jax.experimental.pallas import tpu as pltpu

UNITS = 24
CAT_DIM = 8
FEAT = UNITS + CAT_DIM          # in_features == out_features == 32
SEQ = 8
BATCH = 2
RES_LAYERS = 3
RES_BLOCKS = 2
LN_EPS = 1e-5


def _dft_mats(n):
    k = np.arange(n)
    ang = 2.0 * np.pi * np.outer(k, k) / n
    return np.cos(ang).astype(np.float32), np.sin(ang).astype(np.float32)


def init_params(key):
    ks = jax.random.split(key, 4)

    def nrm(k, shape, scale=0.1):
        return scale * jax.random.normal(k, shape, jnp.float32)

    return dict(
        # resnet blocks: (block, layer, in, out) weights, (block, layer, 1, F) biases
        wres=nrm(ks[0], (RES_BLOCKS, RES_LAYERS, FEAT, FEAT)),
        bres=nrm(ks[1], (RES_BLOCKS, RES_LAYERS, 1, FEAT), 0.01),
        gamma=jnp.ones((RES_BLOCKS, 1, FEAT), jnp.float32),
        beta=jnp.zeros((RES_BLOCKS, 1, FEAT), jnp.float32),
        # w4/b4 stack: [fwr_layer, output, backcast_layer, back_cast]
        w4=nrm(ks[2], (4, FEAT, FEAT)),
        b4=nrm(ks[3], (4, 1, FEAT), 0.01),
    )


@jax.jit
def neural_block(x, params):
    B, S, F = x.shape
    BS = B * S
    NL = RES_BLOCKS * RES_LAYERS
    WOFF = 2 * F                      # slab32: start of folded resnet weights
    VOFF = WOFF + NL * F              # slab32: start of per-layer (b', gamma, beta)
    inv_n = 1.0 / (S * F)

    # ------------------------- host-side constant folding -------------------
    cs, ss = _dft_mats(S)
    cf, sf = _dft_mats(F)
    eye_b = np.eye(B, dtype=np.float32)

    # Left (sequence-axis) DFT, block-diagonal over batch, cos stacked over sin:
    #   ld @ v == [kron(I_B,Cs) @ v ; kron(I_B,Ss) @ v]            (2BS, BS)
    ld = jnp.asarray(np.concatenate(
        [np.kron(eye_b, cs), np.kron(eye_b, ss)], axis=0))

    # Right (feature-axis) DFT with the "A@C - B@S" fused into one matmul:
    #   [zc | zs] @ [Cf ; -Sf]                                      (2F, F)
    rd = jnp.asarray(np.concatenate([cf, -sf], axis=0))

    # LayerNorm mean-centering folded into the resnet Linears:
    #   W' = W (I - 11^T/F),  b' = b - mean(b)   ->   y' = x W' + b' is centered.
    center = jnp.asarray(np.eye(F, dtype=np.float32)
                         - np.full((F, F), 1.0 / F, dtype=np.float32))
    wres_c = (params["wres"] @ center).reshape(NL * F, F)          # (NL*F, F)
    bres_c = params["bres"] - params["bres"].mean(-1, keepdims=True)

    # slab32: every 32-lane-wide constant in ONE array (one DMA).
    #   rows [0, 2F)             : rd
    #   rows [WOFF+i*F, +F)      : folded resnet weight of layer i
    #   rows [VOFF+8*i, +3)      : [bias' ; gamma ; beta] of layer i (8-aligned)
    zero5 = jnp.zeros((5, F), jnp.float32)
    vec_rows = []
    for blk in range(RES_BLOCKS):
        for lyr in range(RES_LAYERS):
            vec_rows.append(jnp.concatenate(
                [bres_c[blk, lyr], params["gamma"][blk], params["beta"][blk],
                 zero5], axis=0))                                   # (8, F)
    slab32 = jnp.concatenate([rd, wres_c] + vec_rows, axis=0)       # (VOFF+8*NL, F)

    # slab64: merged-head constants (one DMA).
    #   rows [0, 4F)    : wh1 = [blkdiag(inv Cf w0, inv Cf w2) ; -blkdiag(inv Sf w0, inv Sf w2)]
    #   rows [4F, 6F)   : wh2 = blkdiag(w1, w3)
    #   rows [6F, 6F+2) : [b0|b2] and [b1|b3]
    w4, b4 = params["w4"], params["b4"]
    zf = jnp.zeros((F, F), jnp.float32)
    cf_j, sf_j = jnp.asarray(cf), jnp.asarray(sf)
    fw = inv_n * (cf_j @ w4[0])
    bw = inv_n * (cf_j @ w4[2])
    fs = inv_n * (sf_j @ w4[0])
    bs = inv_n * (sf_j @ w4[2])
    wh1 = jnp.concatenate([
        jnp.concatenate([fw, zf], axis=1),
        jnp.concatenate([zf, bw], axis=1),
        jnp.concatenate([-fs, zf], axis=1),
        jnp.concatenate([zf, -bs], axis=1)], axis=0)                # (4F, 2F)
    wh2 = jnp.concatenate([
        jnp.concatenate([w4[1], zf], axis=1),
        jnp.concatenate([zf, w4[3]], axis=1)], axis=0)              # (2F, 2F)
    bh = jnp.concatenate([
        jnp.concatenate([b4[0], b4[2]], axis=1),
        jnp.concatenate([b4[1], b4[3]], axis=1)], axis=0)           # (2, 2F)
    slab64 = jnp.concatenate([wh1, wh2, bh], axis=0)                # (6F+2, 2F)

    # ------------------------------- kernel ---------------------------------
    def kernel(x_ref, ld_ref, c32_ref, c64_ref, out_ref, cat_ref):
        f32 = jnp.float32
        xin = x_ref[...]                                  # (BS, F)
        ld_m = ld_ref[...]                                # (2BS, BS)

        def real_dft2(v, rhs):
            # real part of a 2-D (i)DFT of v as two fused matmuls:
            #   z = [Cs v ; Ss v]  (left, block-diag over batch)
            #   out = [Cs v | Ss v] @ rhs     (rhs already carries [C ; -S] / scale / head weight)
            # The lane-pack [z_top | z_bot] is assembled through the VMEM
            # scratch with masked stores (idle ld/st slots, robust lowering).
            width = v.shape[-1]
            z = jnp.dot(ld_m, v, preferred_element_type=f32)        # (2BS, width)
            cat_ref[:, 0:width] = z[0:BS]
            cat_ref[:, width:2 * width] = z[BS:2 * BS]
            zcat = cat_ref[:, 0:2 * width]                          # (BS, 2*width)
            return jnp.dot(zcat, rhs, preferred_element_type=f32)

        # ---- real(fft2(x)) ----
        h = real_dft2(xin, c32_ref[0:2 * F, :])                     # (BS, F)

        # ---- 2 x FFResNetBlock: 3 x [Linear -> LayerNorm -> ReLU], + skip ----
        for blk in range(RES_BLOCKS):
            blk_res = h
            for lyr in range(RES_LAYERS):
                i = blk * RES_LAYERS + lyr
                wk = c32_ref[WOFF + i * F:WOFF + (i + 1) * F, :]    # (F, F), mean-fold applied
                vec = c32_ref[VOFF + 8 * i:VOFF + 8 * i + 3, :]     # [b'; gamma; beta]
                y = jnp.dot(h, wk, preferred_element_type=f32) + vec[0:1]
                var = jnp.mean(y * y, axis=-1, keepdims=True)       # y is pre-centered
                y = y * lax.rsqrt(var + LN_EPS) * vec[1:2] + vec[2:3]
                h = jnp.maximum(y, 0.0)
            h = h + blk_res

        x_res = xin - h

        # ---- merged forward/backcast heads ----
        # lane-pack [h | x_res]; the left ifft DFT is applied once, the right
        # ifft DFT + 1/(S*F) + first head Linears are folded into wh1, the
        # second head Linears are the block-diagonal wh2.
        cat_ref[:, 0:F] = h
        cat_ref[:, F:2 * F] = x_res
        stacked = cat_ref[:, 0:2 * F]                               # (BS, 2F)
        h1 = real_dft2(stacked, c64_ref[0:4 * F, :])                # (BS, 2F)
        bias = c64_ref[6 * F:6 * F + 2, :]                          # (2, 2F)
        h1 = jnp.maximum(h1 + bias[0:1], 0.0)
        out_ref[...] = (jnp.dot(h1, c64_ref[4 * F:6 * F, :],
                                preferred_element_type=f32) + bias[1:2])

    x2d = x.reshape(BS, F)
    out = pl.pallas_call(
        kernel,
        out_shape=jax.ShapeDtypeStruct((BS, 2 * F), jnp.float32),
        in_specs=[pl.BlockSpec(memory_space=pltpu.MemorySpace.VMEM)] * 4,
        out_specs=pl.BlockSpec(memory_space=pltpu.MemorySpace.VMEM),
        scratch_shapes=[pltpu.VMEM((BS, 4 * F), jnp.float32)],
    )(x2d, ld, slab32, slab64)

    # lanes [0:F] = forward output, lanes [F:2F] = backcast output.
    x_out = out[:, :F].reshape(B, S, F)
    x_res_out = out[:, F:].reshape(B, S, F)
    return x_res_out, x_out


def reference(x, params):
    """Pure-JAX reference mirroring the PyTorch forward (uses jnp.fft)."""
    res = x
    xr = jnp.real(jnp.fft.fft2(x))
    for blk in range(RES_BLOCKS):
        blk_res = xr
        for lyr in range(RES_LAYERS):
            y = xr @ params["wres"][blk, lyr] + params["bres"][blk, lyr]
            mu = y.mean(-1, keepdims=True)
            var = ((y - mu) ** 2).mean(-1, keepdims=True)
            y = (y - mu) / jnp.sqrt(var + LN_EPS) * params["gamma"][blk] + params["beta"][blk]
            xr = jax.nn.relu(y)
        xr = xr + blk_res
    x_res = res - xr
    xr = jnp.real(jnp.fft.ifft2(xr))
    xr = jax.nn.relu(xr @ params["w4"][0] + params["b4"][0])
    xr = xr @ params["w4"][1] + params["b4"][1]
    x_res = jnp.real(jnp.fft.ifft2(x_res))
    x_res = jax.nn.relu(x_res @ params["w4"][2] + params["b4"][2])
    x_res = x_res @ params["w4"][3] + params["b4"][3]
    return x_res, xr


if __name__ == "__main__":
    key = jax.random.PRNGKey(0)
    kx, kp = jax.random.split(key)
    x = jax.random.normal(kx, (BATCH, SEQ, FEAT), jnp.float32)
    params = init_params(kp)

    xres, xout = neural_block(x, params)
    jax.block_until_ready((xres, xout))

    ref_res, ref_out = reference(x, params)
    # Tolerance sized for default (single-pass bf16) MXU matmul precision.
    assert np.allclose(np.asarray(xres), np.asarray(ref_res), atol=3e-2, rtol=3e-2), \
        float(np.max(np.abs(np.asarray(xres) - np.asarray(ref_res))))
    assert np.allclose(np.asarray(xout), np.asarray(ref_out), atol=3e-2, rtol=3e-2), \
        float(np.max(np.abs(np.asarray(xout) - np.asarray(ref_out))))

    print("KERNEL_OK")
</pallas_src>

<mosaic_0001>
module attributes {stable_mosaic.version = 11 : i64} {
  func.func @kernel(%arg0: memref<16x32xf32, #tpu.memory_space<vmem>>, %arg1: memref<32x16xf32, #tpu.memory_space<vmem>>, %arg2: memref<304x32xf32, #tpu.memory_space<vmem>>, %arg3: memref<194x64xf32, #tpu.memory_space<vmem>>, %arg4: memref<16x64xf32, #tpu.memory_space<vmem>>, %arg5: memref<16x128xf32, #tpu.memory_space<vmem>>) attributes {dimension_semantics = [], scalar_prefetch = 0 : i64, scratch_operands = 1 : i64, tpu.core_type = #tpu.core_type<tc>} {
    %c0 = arith.constant 0 : index
    %c0_0 = arith.constant 0 : index
    %0 = vector.load %arg0[%c0, %c0_0] : memref<16x32xf32, #tpu.memory_space<vmem>>, vector<16x32xf32>
    %c0_1 = arith.constant 0 : index
    %c0_2 = arith.constant 0 : index
    %1 = vector.load %arg1[%c0_1, %c0_2] : memref<32x16xf32, #tpu.memory_space<vmem>>, vector<32x16xf32>
    %c0_3 = arith.constant 0 : index
    %c0_4 = arith.constant 0 : index
    %2 = vector.load %arg2[%c0_3, %c0_4] : memref<304x32xf32, #tpu.memory_space<vmem>>, vector<64x32xf32>
    %cst = arith.constant dense<0.000000e+00> : vector<32x32xf32>
    %3 = tpu.matmul %1, %0, %cst {dimension_numbers = #tpu.dot_dimension_numbers<[1], [0], [0], [1], [0, 0, 1, 1], [], []>} : vector<32x16xf32>, vector<16x32xf32>, vector<32x32xf32> -> vector<32x32xf32>
    %4 = vector.extract_strided_slice %3 {offsets = [0, 0], sizes = [16, 32], strides = [1, 1]} : vector<32x32xf32> to vector<16x32xf32>
    %c0_5 = arith.constant 0 : index
    %c0_6 = arith.constant 0 : index
    %5 = vector.load %arg5[%c0_5, %c0_6] : memref<16x128xf32, #tpu.memory_space<vmem>>, vector<16x32xf32>
    tpu.vector_store %arg5[%c0_5, %c0_6], %4 {strides = array<i32>} : memref<16x128xf32, #tpu.memory_space<vmem>>, vector<16x32xf32>,
    %6 = vector.extract_strided_slice %3 {offsets = [16, 0], sizes = [16, 32], strides = [1, 1]} : vector<32x32xf32> to vector<16x32xf32>
    %c0_7 = arith.constant 0 : index
    %c32 = arith.constant 32 : index
    %7 = vector.load %arg5[%c0_7, %c32] : memref<16x128xf32, #tpu.memory_space<vmem>>, vector<16x32xf32>
    tpu.vector_store %arg5[%c0_7, %c32], %6 {strides = array<i32>} : memref<16x128xf32, #tpu.memory_space<vmem>>, vector<16x32xf32>,
    %c0_8 = arith.constant 0 : index
    %c0_9 = arith.constant 0 : index
    %8 = vector.load %arg5[%c0_8, %c0_9] : memref<16x128xf32, #tpu.memory_space<vmem>>, vector<16x64xf32>
    %cst_10 = arith.constant dense<0.000000e+00> : vector<16x32xf32>
    %9 = tpu.matmul %8, %2, %cst_10 {dimension_numbers = #tpu.dot_dimension_numbers<[1], [0], [0], [1], [0, 0, 1, 1], [], []>} : vector<16x64xf32>, vector<64x32xf32>, vector<16x32xf32> -> vector<16x32xf32>
    %c64 = arith.constant 64 : index
    %c0_11 = arith.constant 0 : index
    %10 = vector.load %arg2[%c64, %c0_11] : memref<304x32xf32, #tpu.memory_space<vmem>>, vector<32x32xf32>
    %c256 = arith.constant 256 : index
    %c0_12 = arith.constant 0 : index
    %11 = vector.load %arg2[%c256, %c0_12] : memref<304x32xf32, #tpu.memory_space<vmem>>, vector<3x32xf32>
    %cst_13 = arith.constant dense<0.000000e+00> : vector<16x32xf32>
    %12 = tpu.matmul %9, %10, %cst_13 {dimension_numbers = #tpu.dot_dimension_numbers<[1], [0], [0], [1], [0, 0, 1, 1], [], []>} : vector<16x32xf32>, vector<32x32xf32>, vector<16x32xf32> -> vector<16x32xf32>
    %13 = vector.extract_strided_slice %11 {offsets = [0, 0], sizes = [1, 32], strides = [1, 1]} : vector<3x32xf32> to vector<1x32xf32>
    %14 = vector.broadcast %13 : vector<1x32xf32> to vector<16x32xf32>
    %15 = arith.addf %12, %14 : vector<16x32xf32>
    %16 = arith.mulf %15, %15 : vector<16x32xf32>
    %cst_14 = arith.constant dense<0.000000e+00> : vector<16xf32>
    %17 = vector.multi_reduction <add>, %16, %cst_14 [1] : vector<16x32xf32> to vector<16xf32>
    %18 = vector.shape_cast %17 : vector<16xf32> to vector<16x1xf32>
    %cst_15 = arith.constant 3.200000e+01 : f32
    %19 = vector.broadcast %cst_15 : f32 to vector<16x1xf32>
    %20 = arith.divf %18, %19 : vector<16x1xf32>
    %cst_16 = arith.constant 9.99999974E-6 : f32
    %21 = vector.broadcast %cst_16 : f32 to vector<16x1xf32>
    %22 = arith.addf %20, %21 : vector<16x1xf32>
    %23 = math.rsqrt %22 : vector<16x1xf32>
    %24 = vector.broadcast %23 : vector<16x1xf32> to vector<16x32xf32>
    %25 = arith.mulf %15, %24 : vector<16x32xf32>
    %26 = vector.extract_strided_slice %11 {offsets = [1, 0], sizes = [1, 32], strides = [1, 1]} : vector<3x32xf32> to vector<1x32xf32>
    %27 = vector.broadcast %26 : vector<1x32xf32> to vector<16x32xf32>
    %28 = arith.mulf %25, %27 : vector<16x32xf32>
    %29 = vector.extract_strided_slice %11 {offsets = [2, 0], sizes = [1, 32], strides = [1, 1]} : vector<3x32xf32> to vector<1x32xf32>
    %30 = vector.broadcast %29 : vector<1x32xf32> to vector<16x32xf32>
    %31 = arith.addf %28, %30 : vector<16x32xf32>
    %cst_17 = arith.constant 0.000000e+00 : f32
    %32 = vector.broadcast %cst_17 : f32 to vector<16x32xf32>
    %33 = arith.maximumf %31, %32 : vector<16x32xf32>
    %c96 = arith.constant 96 : index
    %c0_18 = arith.constant 0 : index
    %34 = vector.load %arg2[%c96, %c0_18] : memref<304x32xf32, #tpu.memory_space<vmem>>, vector<32x32xf32>
    %c264 = arith.constant 264 : index
    %c0_19 = arith.constant 0 : index
    %35 = vector.load %arg2[%c264, %c0_19] : memref<304x32xf32, #tpu.memory_space<vmem>>, vector<3x32xf32>
    %cst_20 = arith.constant dense<0.000000e+00> : vector<16x32xf32>
    %36 = tpu.matmul %33, %34, %cst_20 {dimension_numbers = #tpu.dot_dimension_numbers<[1], [0], [0], [1], [0, 0, 1, 1], [], []>} : vector<16x32xf32>, vector<32x32xf32>, vector<16x32xf32> -> vector<16x32xf32>
    %37 = vector.extract_strided_slice %35 {offsets = [0, 0], sizes = [1, 32], strides = [1, 1]} : vector<3x32xf32> to vector<1x32xf32>
    %38 = vector.broadcast %37 : vector<1x32xf32> to vector<16x32xf32>
    %39 = arith.addf %36, %38 : vector<16x32xf32>
    %40 = arith.mulf %39, %39 : vector<16x32xf32>
    %cst_21 = arith.constant dense<0.000000e+00> : vector<16xf32>
    %41 = vector.multi_reduction <add>, %40, %cst_21 [1] : vector<16x32xf32> to vector<16xf32>
    %42 = vector.shape_cast %41 : vector<16xf32> to vector<16x1xf32>
    %cst_22 = arith.constant 3.200000e+01 : f32
    %43 = vector.broadcast %cst_22 : f32 to vector<16x1xf32>
    %44 = arith.divf %42, %43 : vector<16x1xf32>
    %cst_23 = arith.constant 9.99999974E-6 : f32
    %45 = vector.broadcast %cst_23 : f32 to vector<16x1xf32>
    %46 = arith.addf %44, %45 : vector<16x1xf32>
    %47 = math.rsqrt %46 : vector<16x1xf32>
    %48 = vector.broadcast %47 : vector<16x1xf32> to vector<16x32xf32>
    %49 = arith.mulf %39, %48 : vector<16x32xf32>
    %50 = vector.extract_strided_slice %35 {offsets = [1, 0], sizes = [1, 32], strides = [1, 1]} : vector<3x32xf32> to vector<1x32xf32>
    %51 = vector.broadcast %50 : vector<1x32xf32> to vector<16x32xf32>
    %52 = arith.mulf %49, %51 : vector<16x32xf32>
    %53 = vector.extract_strided_slice %35 {offsets = [2, 0], sizes = [1, 32], strides = [1, 1]} : vector<3x32xf32> to vector<1x32xf32>
    %54 = vector.broadcast %53 : vector<1x32xf32> to vector<16x32xf32>
    %55 = arith.addf %52, %54 : vector<16x32xf32>
    %cst_24 = arith.constant 0.000000e+00 : f32
    %56 = vector.broadcast %cst_24 : f32 to vector<16x32xf32>
    %57 = arith.maximumf %55, %56 : vector<16x32xf32>
    %c128 = arith.constant 128 : index
    %c0_25 = arith.constant 0 : index
    %58 = vector.load %arg2[%c128, %c0_25] : memref<304x32xf32, #tpu.memory_space<vmem>>, vector<32x32xf32>
    %c272 = arith.constant 272 : index
    %c0_26 = arith.constant 0 : index
    %59 = vector.load %arg2[%c272, %c0_26] : memref<304x32xf32, #tpu.memory_space<vmem>>, vector<3x32xf32>
    %cst_27 = arith.constant dense<0.000000e+00> : vector<16x32xf32>
    %60 = tpu.matmul %57, %58, %cst_27 {dimension_numbers = #tpu.dot_dimension_numbers<[1], [0], [0], [1], [0, 0, 1, 1], [], []>} : vector<16x32xf32>, vector<32x32xf32>, vector<16x32xf32> -> vector<16x32xf32>
    %61 = vector.extract_strided_slice %59 {offsets = [0, 0], sizes = [1, 32], strides = [1, 1]} : vector<3x32xf32> to vector<1x32xf32>
    %62 = vector.broadcast %61 : vector<1x32xf32> to vector<16x32xf32>
    %63 = arith.addf %60, %62 : vector<16x32xf32>
    %64 = arith.mulf %63, %63 : vector<16x32xf32>
    %cst_28 = arith.constant dense<0.000000e+00> : vector<16xf32>
    %65 = vector.multi_reduction <add>, %64, %cst_28 [1] : vector<16x32xf32> to vector<16xf32>
    %66 = vector.shape_cast %65 : vector<16xf32> to vector<16x1xf32>
    %cst_29 = arith.constant 3.200000e+01 : f32
    %67 = vector.broadcast %cst_29 : f32 to vector<16x1xf32>
    %68 = arith.divf %66, %67 : vector<16x1xf32>
    %cst_30 = arith.constant 9.99999974E-6 : f32
    %69 = vector.broadcast %cst_30 : f32 to vector<16x1xf32>
    %70 = arith.addf %68, %69 : vector<16x1xf32>
    %71 = math.rsqrt %70 : vector<16x1xf32>
    %72 = vector.broadcast %71 : vector<16x1xf32> to vector<16x32xf32>
    %73 = arith.mulf %63, %72 : vector<16x32xf32>
    %74 = vector.extract_strided_slice %59 {offsets = [1, 0], sizes = [1, 32], strides = [1, 1]} : vector<3x32xf32> to vector<1x32xf32>
    %75 = vector.broadcast %74 : vector<1x32xf32> to vector<16x32xf32>
    %76 = arith.mulf %73, %75 : vector<16x32xf32>
    %77 = vector.extract_strided_slice %59 {offsets = [2, 0], sizes = [1, 32], strides = [1, 1]} : vector<3x32xf32> to vector<1x32xf32>
    %78 = vector.broadcast %77 : vector<1x32xf32> to vector<16x32xf32>
    %79 = arith.addf %76, %78 : vector<16x32xf32>
    %cst_31 = arith.constant 0.000000e+00 : f32
    %80 = vector.broadcast %cst_31 : f32 to vector<16x32xf32>
    %81 = arith.maximumf %79, %80 : vector<16x32xf32>
    %82 = arith.addf %81, %9 : vector<16x32xf32>
    %c160 = arith.constant 160 : index
    %c0_32 = arith.constant 0 : index
    %83 = vector.load %arg2[%c160, %c0_32] : memref<304x32xf32, #tpu.memory_space<vmem>>, vector<32x32xf32>
    %c280 = arith.constant 280 : index
    %c0_33 = arith.constant 0 : index
    %84 = vector.load %arg2[%c280, %c0_33] : memref<304x32xf32, #tpu.memory_space<vmem>>, vector<3x32xf32>
    %cst_34 = arith.constant dense<0.000000e+00> : vector<16x32xf32>
    %85 = tpu.matmul %82, %83, %cst_34 {dimension_numbers = #tpu.dot_dimension_numbers<[1], [0], [0], [1], [0, 0, 1, 1], [], []>} : vector<16x32xf32>, vector<32x32xf32>, vector<16x32xf32> -> vector<16x32xf32>
    %86 = vector.extract_strided_slice %84 {offsets = [0, 0], sizes = [1, 32], strides = [1, 1]} : vector<3x32xf32> to vector<1x32xf32>
    %87 = vector.broadcast %86 : vector<1x32xf32> to vector<16x32xf32>
    %88 = arith.addf %85, %87 : vector<16x32xf32>
    %89 = arith.mulf %88, %88 : vector<16x32xf32>
    %cst_35 = arith.constant dense<0.000000e+00> : vector<16xf32>
    %90 = vector.multi_reduction <add>, %89, %cst_35 [1] : vector<16x32xf32> to vector<16xf32>
    %91 = vector.shape_cast %90 : vector<16xf32> to vector<16x1xf32>
    %cst_36 = arith.constant 3.200000e+01 : f32
    %92 = vector.broadcast %cst_36 : f32 to vector<16x1xf32>
    %93 = arith.divf %91, %92 : vector<16x1xf32>
    %cst_37 = arith.constant 9.99999974E-6 : f32
    %94 = vector.broadcast %cst_37 : f32 to vector<16x1xf32>
    %95 = arith.addf %93, %94 : vector<16x1xf32>
    %96 = math.rsqrt %95 : vector<16x1xf32>
    %97 = vector.broadcast %96 : vector<16x1xf32> to vector<16x32xf32>
    %98 = arith.mulf %88, %97 : vector<16x32xf32>
    %99 = vector.extract_strided_slice %84 {offsets = [1, 0], sizes = [1, 32], strides = [1, 1]} : vector<3x32xf32> to vector<1x32xf32>
    %100 = vector.broadcast %99 : vector<1x32xf32> to vector<16x32xf32>
    %101 = arith.mulf %98, %100 : vector<16x32xf32>
    %102 = vector.extract_strided_slice %84 {offsets = [2, 0], sizes = [1, 32], strides = [1, 1]} : vector<3x32xf32> to vector<1x32xf32>
    %103 = vector.broadcast %102 : vector<1x32xf32> to vector<16x32xf32>
    %104 = arith.addf %101, %103 : vector<16x32xf32>
    %cst_38 = arith.constant 0.000000e+00 : f32
    %105 = vector.broadcast %cst_38 : f32 to vector<16x32xf32>
    %106 = arith.maximumf %104, %105 : vector<16x32xf32>
    %c192 = arith.constant 192 : index
    %c0_39 = arith.constant 0 : index
    %107 = vector.load %arg2[%c192, %c0_39] : memref<304x32xf32, #tpu.memory_space<vmem>>, vector<32x32xf32>
    %c288 = arith.constant 288 : index
    %c0_40 = arith.constant 0 : index
    %108 = vector.load %arg2[%c288, %c0_40] : memref<304x32xf32, #tpu.memory_space<vmem>>, vector<3x32xf32>
    %cst_41 = arith.constant dense<0.000000e+00> : vector<16x32xf32>
    %109 = tpu.matmul %106, %107, %cst_41 {dimension_numbers = #tpu.dot_dimension_numbers<[1], [0], [0], [1], [0, 0, 1, 1], [], []>} : vector<16x32xf32>, vector<32x32xf32>, vector<16x32xf32> -> vector<16x32xf32>
    %110 = vector.extract_strided_slice %108 {offsets = [0, 0], sizes = [1, 32], strides = [1, 1]} : vector<3x32xf32> to vector<1x32xf32>
    %111 = vector.broadcast %110 : vector<1x32xf32> to vector<16x32xf32>
    %112 = arith.addf %109, %111 : vector<16x32xf32>
    %113 = arith.mulf %112, %112 : vector<16x32xf32>
    %cst_42 = arith.constant dense<0.000000e+00> : vector<16xf32>
    %114 = vector.multi_reduction <add>, %113, %cst_42 [1] : vector<16x32xf32> to vector<16xf32>
    %115 = vector.shape_cast %114 : vector<16xf32> to vector<16x1xf32>
    %cst_43 = arith.constant 3.200000e+01 : f32
    %116 = vector.broadcast %cst_43 : f32 to vector<16x1xf32>
    %117 = arith.divf %115, %116 : vector<16x1xf32>
    %cst_44 = arith.constant 9.99999974E-6 : f32
    %118 = vector.broadcast %cst_44 : f32 to vector<16x1xf32>
    %119 = arith.addf %117, %118 : vector<16x1xf32>
    %120 = math.rsqrt %119 : vector<16x1xf32>
    %121 = vector.broadcast %120 : vector<16x1xf32> to vector<16x32xf32>
    %122 = arith.mulf %112, %121 : vector<16x32xf32>
    %123 = vector.extract_strided_slice %108 {offsets = [1, 0], sizes = [1, 32], strides = [1, 1]} : vector<3x32xf32> to vector<1x32xf32>
    %124 = vector.broadcast %123 : vector<1x32xf32> to vector<16x32xf32>
    %125 = arith.mulf %122, %124 : vector<16x32xf32>
    %126 = vector.extract_strided_slice %108 {offsets = [2, 0], sizes = [1, 32], strides = [1, 1]} : vector<3x32xf32> to vector<1x32xf32>
    %127 = vector.broadcast %126 : vector<1x32xf32> to vector<16x32xf32>
    %128 = arith.addf %125, %127 : vector<16x32xf32>
    %cst_45 = arith.constant 0.000000e+00 : f32
    %129 = vector.broadcast %cst_45 : f32 to vector<16x32xf32>
    %130 = arith.maximumf %128, %129 : vector<16x32xf32>
    %c224 = arith.constant 224 : index
    %c0_46 = arith.constant 0 : index
    %131 = vector.load %arg2[%c224, %c0_46] : memref<304x32xf32, #tpu.memory_space<vmem>>, vector<32x32xf32>
    %c296 = arith.constant 296 : index
    %c0_47 = arith.constant 0 : index
    %132 = vector.load %arg2[%c296, %c0_47] : memref<304x32xf32, #tpu.memory_space<vmem>>, vector<3x32xf32>
    %cst_48 = arith.constant dense<0.000000e+00> : vector<16x32xf32>
    %133 = tpu.matmul %130, %131, %cst_48 {dimension_numbers = #tpu.dot_dimension_numbers<[1], [0], [0], [1], [0, 0, 1, 1], [], []>} : vector<16x32xf32>, vector<32x32xf32>, vector<16x32xf32> -> vector<16x32xf32>
    %134 = vector.extract_strided_slice %132 {offsets = [0, 0], sizes = [1, 32], strides = [1, 1]} : vector<3x32xf32> to vector<1x32xf32>
    %135 = vector.broadcast %134 : vector<1x32xf32> to vector<16x32xf32>
    %136 = arith.addf %133, %135 : vector<16x32xf32>
    %137 = arith.mulf %136, %136 : vector<16x32xf32>
    %cst_49 = arith.constant dense<0.000000e+00> : vector<16xf32>
    %138 = vector.multi_reduction <add>, %137, %cst_49 [1] : vector<16x32xf32> to vector<16xf32>
    %139 = vector.shape_cast %138 : vector<16xf32> to vector<16x1xf32>
    %cst_50 = arith.constant 3.200000e+01 : f32
    %140 = vector.broadcast %cst_50 : f32 to vector<16x1xf32>
    %141 = arith.divf %139, %140 : vector<16x1xf32>
    %cst_51 = arith.constant 9.99999974E-6 : f32
    %142 = vector.broadcast %cst_51 : f32 to vector<16x1xf32>
    %143 = arith.addf %141, %142 : vector<16x1xf32>
    %144 = math.rsqrt %143 : vector<16x1xf32>
    %145 = vector.broadcast %144 : vector<16x1xf32> to vector<16x32xf32>
    %146 = arith.mulf %136, %145 : vector<16x32xf32>
    %147 = vector.extract_strided_slice %132 {offsets = [1, 0], sizes = [1, 32], strides = [1, 1]} : vector<3x32xf32> to vector<1x32xf32>
    %148 = vector.broadcast %147 : vector<1x32xf32> to vector<16x32xf32>
    %149 = arith.mulf %146, %148 : vector<16x32xf32>
    %150 = vector.extract_strided_slice %132 {offsets = [2, 0], sizes = [1, 32], strides = [1, 1]} : vector<3x32xf32> to vector<1x32xf32>
    %151 = vector.broadcast %150 : vector<1x32xf32> to vector<16x32xf32>
    %152 = arith.addf %149, %151 : vector<16x32xf32>
    %cst_52 = arith.constant 0.000000e+00 : f32
    %153 = vector.broadcast %cst_52 : f32 to vector<16x32xf32>
    %154 = arith.maximumf %152, %153 : vector<16x32xf32>
    %155 = arith.addf %154, %82 : vector<16x32xf32>
    %156 = arith.subf %0, %155 : vector<16x32xf32>
    %c0_53 = arith.constant 0 : index
    %c0_54 = arith.constant 0 : index
    %157 = vector.load %arg5[%c0_53, %c0_54] : memref<16x128xf32, #tpu.memory_space<vmem>>, vector<16x32xf32>
    tpu.vector_store %arg5[%c0_53, %c0_54], %155 {strides = array<i32>} : memref<16x128xf32, #tpu.memory_space<vmem>>, vector<16x32xf32>,
    %c0_55 = arith.constant 0 : index
    %c32_56 = arith.constant 32 : index
    %158 = vector.load %arg5[%c0_55, %c32_56] : memref<16x128xf32, #tpu.memory_space<vmem>>, vector<16x32xf32>
    tpu.vector_store %arg5[%c0_55, %c32_56], %156 {strides = array<i32>} : memref<16x128xf32, #tpu.memory_space<vmem>>, vector<16x32xf32>,
    %c0_57 = arith.constant 0 : index
    %c0_58 = arith.constant 0 : index
    %159 = vector.load %arg5[%c0_57, %c0_58] : memref<16x128xf32, #tpu.memory_space<vmem>>, vector<16x64xf32>
    %c0_59 = arith.constant 0 : index
    %c0_60 = arith.constant 0 : index
    %160 = vector.load %arg3[%c0_59, %c0_60] : memref<194x64xf32, #tpu.memory_space<vmem>>, vector<128x64xf32>
    %cst_61 = arith.constant dense<0.000000e+00> : vector<32x64xf32>
    %161 = tpu.matmul %1, %159, %cst_61 {dimension_numbers = #tpu.dot_dimension_numbers<[1], [0], [0], [1], [0, 0, 1, 1], [], []>} : vector<32x16xf32>, vector<16x64xf32>, vector<32x64xf32> -> vector<32x64xf32>
    %162 = vector.extract_strided_slice %161 {offsets = [0, 0], sizes = [16, 64], strides = [1, 1]} : vector<32x64xf32> to vector<16x64xf32>
    %c0_62 = arith.constant 0 : index
    %c0_63 = arith.constant 0 : index
    %163 = vector.load %arg5[%c0_62, %c0_63] : memref<16x128xf32, #tpu.memory_space<vmem>>, vector<16x64xf32>
    tpu.vector_store %arg5[%c0_62, %c0_63], %162 {strides = array<i32>} : memref<16x128xf32, #tpu.memory_space<vmem>>, vector<16x64xf32>,
    %164 = vector.extract_strided_slice %161 {offsets = [16, 0], sizes = [16, 64], strides = [1, 1]} : vector<32x64xf32> to vector<16x64xf32>
    %c0_64 = arith.constant 0 : index
    %c64_65 = arith.constant 64 : index
    %165 = vector.load %arg5[%c0_64, %c64_65] : memref<16x128xf32, #tpu.memory_space<vmem>>, vector<16x64xf32>
    tpu.vector_store %arg5[%c0_64, %c64_65], %164 {strides = array<i32>} : memref<16x128xf32, #tpu.memory_space<vmem>>, vector<16x64xf32>,
    %c0_66 = arith.constant 0 : index
    %c0_67 = arith.constant 0 : index
    %166 = vector.load %arg5[%c0_66, %c0_67] : memref<16x128xf32, #tpu.memory_space<vmem>>, vector<16x128xf32>
    %cst_68 = arith.constant dense<0.000000e+00> : vector<16x64xf32>
    %167 = tpu.matmul %166, %160, %cst_68 {dimension_numbers = #tpu.dot_dimension_numbers<[1], [0], [0], [1], [0, 0, 1, 1], [], []>} : vector<16x128xf32>, vector<128x64xf32>, vector<16x64xf32> -> vector<16x64xf32>
    %c192_69 = arith.constant 192 : index
    %c0_70 = arith.constant 0 : index
    %168 = vector.load %arg3[%c192_69, %c0_70] : memref<194x64xf32, #tpu.memory_space<vmem>>, vector<2x64xf32>
    %169 = vector.extract_strided_slice %168 {offsets = [0, 0], sizes = [1, 64], strides = [1, 1]} : vector<2x64xf32> to vector<1x64xf32>
    %170 = vector.broadcast %169 : vector<1x64xf32> to vector<16x64xf32>
    %171 = arith.addf %167, %170 : vector<16x64xf32>
    %cst_71 = arith.constant 0.000000e+00 : f32
    %172 = vector.broadcast %cst_71 : f32 to vector<16x64xf32>
    %173 = arith.maximumf %171, %172 : vector<16x64xf32>
    %c128_72 = arith.constant 128 : index
    %c0_73 = arith.constant 0 : index
    %174 = vector.load %arg3[%c128_72, %c0_73] : memref<194x64xf32, #tpu.memory_space<vmem>>, vector<64x64xf32>
    %cst_74 = arith.constant dense<0.000000e+00> : vector<16x64xf32>
    %175 = tpu.matmul %173, %174, %cst_74 {dimension_numbers = #tpu.dot_dimension_numbers<[1], [0], [0], [1], [0, 0, 1, 1], [], []>} : vector<16x64xf32>, vector<64x64xf32>, vector<16x64xf32> -> vector<16x64xf32>
    %176 = vector.extract_strided_slice %168 {offsets = [1, 0], sizes = [1, 64], strides = [1, 1]} : vector<2x64xf32> to vector<1x64xf32>
    %177 = vector.broadcast %176 : vector<1x64xf32> to vector<16x64xf32>
    %178 = arith.addf %175, %177 : vector<16x64xf32>
    %c0_75 = arith.constant 0 : index
    %c0_76 = arith.constant 0 : index
    %179 = vector.load %arg4[%c0_75, %c0_76] : memref<16x64xf32, #tpu.memory_space<vmem>>, vector<16x64xf32>
    tpu.vector_store %arg4[%c0_75, %c0_76], %178 {strides = array<i32>} : memref<16x64xf32, #tpu.memory_space<vmem>>, vector<16x64xf32>,
    return
  }
}

</mosaic_0001>

<llo_original>
// kernel: neural_block.1
$region0: #{neural_block.1}
  #allocation0 [shape = 'u32[]', space=smem, size = 0x4, offset = 0x4, fixed_abs, tag = 'smem constant byte address 0x4 - core index']
  #allocation1 [shape = 'u32[144,128]{1,0:T(1,128)}', space=vmem, size = 0x12000, scoped, tag = 'internal scratch']
  #allocation2 [shape = 'f32[16,128]{1,0:T(8,128)}', space=vmem, size = 0x2000, scoped, tag = 'scratch operand']
  %s0 = inlined_call_operand.vmem [shape: f32[16,32], index: 0, kind: input, shape index: {}]
  %s1 = inlined_call_operand.vmem [shape: f32[32,16], index: 1, kind: input, shape index: {}]
  %s2 = inlined_call_operand.vmem [shape: f32[304,32], index: 2, kind: input, shape index: {}]
  %s3 = inlined_call_operand.vmem [shape: f32[194,64], index: 3, kind: input, shape index: {}]
  %s4 = inlined_call_operand.vmem [shape: f32[16,64], index: 4, kind: output, shape index: {}]
  %s5 = sld [smem:[#allocation0]]
  $region26: #{neural_block.1} parent=0
    _
  %s7 = ssub.s32 1, %s5
  %s8 = scalar_select 0, %s7, %s5
  // Predicated region
  $region2: #{neural_block.1} parent=0 // pred_check
    _
  $region3: #{neural_block.1} parent=0 // pred_check_branch
    %10 = sbr.rel (0) target = $region5
  $region4: #{neural_block.1} parent=0 // pred_region
    _
  $region5: #{neural_block.1} parent=0 // pred_fallthru
    _
  // Predicated region
  $region6: #{neural_block.1} parent=0 // pred_check
    _
  $region7: #{neural_block.1} parent=0 // pred_check_branch
    %12 = sbr.rel (0) target = $region9
  $region8: #{neural_block.1} parent=0 // pred_region
    _
  $region9: #{neural_block.1} parent=0 // pred_fallthru
    _
  // Predicated region
  $region10: #{neural_block.1} parent=0 // pred_check
    _
  $region11: #{neural_block.1} parent=0 // pred_check_branch
    %14 = sbr.rel (0) target = $region13
  $region12: #{neural_block.1} parent=0 // pred_region
    _
  $region13: #{neural_block.1} parent=0 // pred_fallthru
    _
  // Predicated region
  $region14: #{neural_block.1} parent=0 // pred_check
    _
  $region15: #{neural_block.1} parent=0 // pred_check_branch
    %16 = sbr.rel (0) target = $region17
  $region16: #{neural_block.1} parent=0 // pred_region
    _
  $region17: #{neural_block.1} parent=0 // pred_fallthru
    _
  %v17 = vld [vmem:[%s0] sm:$0xff]
  %v18 = vld [vmem:[%s0 + $0x8] sm:$0xff]
  %v19 = vld [vmem:[%s1] sm:$0xff]
  %v20 = vld [vmem:[%s1 + $0x8] sm:$0xff]
  %v21 = vld [vmem:[%s1 + $0x10] sm:$0xff]
  %v22 = vld [vmem:[%s1 + $0x18] sm:$0xff]
  %v23 = vld [vmem:[%s2] sm:$0xff]
  %v24 = vld [vmem:[%s2 + $0x8] sm:$0xff]
  %v25 = vld [vmem:[%s2 + $0x10] sm:$0xff]
  %v26 = vld [vmem:[%s2 + $0x18] sm:$0xff]
  %v27 = vld [vmem:[%s2 + $0x20] sm:$0xff]
  %v28 = vld [vmem:[%s2 + $0x28] sm:$0xff]
  %v29 = vld [vmem:[%s2 + $0x30] sm:$0xff]
  %v30 = vld [vmem:[%s2 + $0x38] sm:$0xff]
  %vm31 = vcmask 130048
  %v33 = vsel %vm31, %v19, 0
  %v36 = vsel %vm31, %v20, 0
  %v39 = vsel %vm31, %v21, 0
  %v42 = vsel %vm31, %v22, 0
  %44 = vmatprep.subr.mxu0 0.0
  %45 = vmatpush1.msra.mxu0 %v17
  %46 = vmatprep.subr.mxu0 0.0
  %47 = vmatpush1.msra.mxu0 %v18
  %48 = vmatprep.subr.mxu0 0.0
  %49 = vmatpush1.msra.mxu0 0.0
  %50 = vmatprep.subr.mxu0 0.0
  %51 = vmatpush1.msra.mxu0 0.0
  %52 = vmatprep.subr.mxu0 0.0
  %53 = vmatpush1.msra.mxu0 0.0
  %54 = vmatprep.subr.mxu0 0.0
  %55 = vmatpush1.msra.mxu0 0.0
  %56 = vmatprep.subr.mxu0 0.0
  %57 = vmatpush1.msra.mxu0 0.0
  %58 = vmatprep.subr.mxu0 0.0
  %59 = vmatpush1.msra.mxu0 0.0
  %60 = vmatprep.subr.mxu0 0.0
  %61 = vmatpush1.msra.mxu0 0.0
  %62 = vmatprep.subr.mxu0 0.0
  %63 = vmatpush1.msra.mxu0 0.0
  %64 = vmatprep.subr.mxu0 0.0
  %65 = vmatpush1.msra.mxu0 0.0
  %66 = vmatprep.subr.mxu0 0.0
  %67 = vmatpush1.msra.mxu0 0.0
  %68 = vmatprep.subr.mxu0 0.0
  %69 = vmatpush1.msra.mxu0 0.0
  %70 = vmatprep.subr.mxu0 0.0
  %71 = vmatpush1.msra.mxu0 0.0
  %72 = vmatprep.subr.mxu0 0.0
  %73 = vmatpush1.msra.mxu0 0.0
  %74 = vmatprep.subr.mxu0 0.0
  %75 = vmatpush1.msra.mxu0 0.0
  %76 = vmatprep.subr.mxu0 0.0
  %77 = vmatpush1.msra.mxu0 0.0
  %78 = vmatprep.subr.mxu0 0.0
  %79 = vmatpush1.msra.mxu0 0.0
  %80 = vmatprep.subr.mxu0 0.0
  %81 = vmatpush1.msra.mxu0 0.0
  %82 = vmatprep.subr.mxu0 0.0
  %83 = vmatpush1.msra.mxu0 0.0
  %84 = vmatprep.subr.mxu0 0.0
  %85 = vmatpush1.msra.mxu0 0.0
  %86 = vmatprep.subr.mxu0 0.0
  %87 = vmatpush1.msra.mxu0 0.0
  %88 = vmatprep.subr.mxu0 0.0
  %89 = vmatpush1.msra.mxu0 0.0
  %90 = vmatprep.subr.mxu0 0.0
  %91 = vmatpush1.msra.mxu0 0.0
  %92 = vmatprep.subr.mxu0 0.0
  %93 = vmatpush1.msra.mxu0 0.0
  %94 = vmatprep.subr.mxu0 0.0
  %95 = vmatpush1.msra.mxu0 0.0
  %96 = vmatprep.subr.mxu0 0.0
  %97 = vmatpush1.msra.mxu0 0.0
  %98 = vmatprep.subr.mxu0 0.0
  %99 = vmatpush1.msra.mxu0 0.0
  %100 = vmatprep.subr.mxu0 0.0
  %101 = vmatpush1.msra.mxu0 0.0
  %102 = vmatprep.subr.mxu0 0.0
  %103 = vmatpush1.msra.mxu0 0.0
  %104 = vmatprep.subr.mxu0 0.0
  %105 = vmatpush1.msra.mxu0 0.0
  %106 = vmatprep.subr.mxu0 0.0
  %107 = vmatpush1.msra.mxu0 0.0
  %108 = vmatprep.mubr.f32.mxu0 0.0
  %109 = vmatmul.mubr.f32.gmra.mrb[0].mxu0 %v33
  %v110 = vpop.f32.mrb[0].mxu0
  %v111 = vadd.f32 0.0, %v110
  %v112 = vpop.f32.mrb[0].mxu0
  %113 = vmatprep.mubr.f32.mxu0 0.0
  %114 = vmatmul.mubr.f32.gmra.mrb[0].mxu0 %v36
  %v115 = vpop.f32.mrb[0].mxu0
  %v116 = vadd.f32 0.0, %v115
  %v117 = vpop.f32.mrb[0].mxu0
  %118 = vmatprep.mubr.f32.mxu0 0.0
  %119 = vmatmul.mubr.f32.gmra.mrb[0].mxu0 %v39
  %v120 = vpop.f32.mrb[0].mxu0
  %v121 = vadd.f32 0.0, %v120
  %v122 = vpop.f32.mrb[0].mxu0
  %123 = vmatprep.mubr.f32.mxu0 0.0
  %124 = vmatmul.mubr.f32.gmra.mrb[0].mxu0 %v42
  %v125 = vpop.f32.mrb[0].mxu0
  %v126 = vadd.f32 0.0, %v125
  %v127 = vpop.f32.mrb[0].mxu0
  %128 = vdwg.mxu0
  %vm129 = vcmask 261120
  %130 = vst.msk [vmem:[#allocation2] sm:$0xff] %vm129, %v111
  %131 = vst.msk [vmem:[#allocation2 + $0x8] sm:$0xff] %vm129, %v116
  %134 = vrot.lane.b32.xlu0 %v121, 32
  %v135 = vpop.permute.xlu0 %134
  %136 = vrot.lane.b32.xlu0 %v126, 32
  %v137 = vpop.permute.xlu0 %136
  %vm140 = vcmask 523520
  %141 = vst.msk [vmem:[#allocation2] sm:$0xff] %vm140, %v135
  %142 = vst.msk [vmem:[#allocation2 + $0x8] sm:$0xff] %vm140, %v137
  %v143 = vld [vmem:[#allocation2] sm:$0xff]
  %v144 = vld [vmem:[#allocation2 + $0x8] sm:$0xff]
  %vm145 = vcmask 523264
  %v147 = vsel %vm145, %v143, 0
  %v150 = vsel %vm145, %v144, 0
  %152 = vmatprep.subr.mxu0 0.0
  %153 = vmatpush1.msra.mxu0 %v23
  %154 = vmatprep.subr.mxu0 0.0
  %155 = vmatpush1.msra.mxu0 %v24
  %156 = vmatprep.subr.mxu0 0.0
  %157 = vmatpush1.msra.mxu0 %v25
  %158 = vmatprep.subr.mxu0 0.0
  %159 = vmatpush1.msra.mxu0 %v26
  %160 = vmatprep.subr.mxu0 0.0
  %161 = vmatpush1.msra.mxu0 %v27
  %162 = vmatprep.subr.mxu0 0.0
  %163 = vmatpush1.msra.mxu0 %v28
  %164 = vmatprep.subr.mxu0 0.0
  %165 = vmatpush1.msra.mxu0 %v29
  %166 = vmatprep.subr.mxu0 0.0
  %167 = vmatpush1.msra.mxu0 %v30
  %168 = vmatprep.subr.mxu0 0.0
  %169 = vmatpush1.msra.mxu0 0.0
  %170 = vmatprep.subr.mxu0 0.0
  %171 = vmatpush1.msra.mxu0 0.0
  %172 = vmatprep.subr.mxu0 0.0
  %173 = vmatpush1.msra.mxu0 0.0
  %174 = vmatprep.subr.mxu0 0.0
  %175 = vmatpush1.msra.mxu0 0.0
  %176 = vmatprep.subr.mxu0 0.0
  %177 = vmatpush1.msra.mxu0 0.0
  %178 = vmatprep.subr.mxu0 0.0
  %179 = vmatpush1.msra.mxu0 0.0
  %180 = vmatprep.subr.mxu0 0.0
  %181 = vmatpush1.msra.mxu0 0.0
  %182 = vmatprep.subr.mxu0 0.0
  %183 = vmatpush1.msra.mxu0 0.0
  %184 = vmatprep.subr.mxu0 0.0
  %185 = vmatpush1.msra.mxu0 0.0
  %186 = vmatprep.subr.mxu0 0.0
  %187 = vmatpush1.msra.mxu0 0.0
  %188 = vmatprep.subr.mxu0 0.0
  %189 = vmatpush1.msra.mxu0 0.0
  %190 = vmatprep.subr.mxu0 0.0
  %191 = vmatpush1.msra.mxu0 0.0
  %192 = vmatprep.subr.mxu0 0.0
  %193 = vmatpush1.msra.mxu0 0.0
  %194 = vmatprep.subr.mxu0 0.0
  %195 = vmatpush1.msra.mxu0 0.0
  %196 = vmatprep.subr.mxu0 0.0
  %197 = vmatpush1.msra.mxu0 0.0
  %198 = vmatprep.subr.mxu0 0.0
  %199 = vmatpush1.msra.mxu0 0.0
  %200 = vmatprep.subr.mxu0 0.0
  %201 = vmatpush1.msra.mxu0 0.0
  %202 = vmatprep.subr.mxu0 0.0
  %203 = vmatpush1.msra.mxu0 0.0
  %204 = vmatprep.subr.mxu0 0.0
  %205 = vmatpush1.msra.mxu0 0.0
  %206 = vmatprep.subr.mxu0 0.0
  %207 = vmatpush1.msra.mxu0 0.0
  %208 = vmatprep.subr.mxu0 0.0
  %209 = vmatpush1.msra.mxu0 0.0
  %210 = vmatprep.subr.mxu0 0.0
  %211 = vmatpush1.msra.mxu0 0.0
  %212 = vmatprep.subr.mxu0 0.0
  %213 = vmatpush1.msra.mxu0 0.0
  %214 = vmatprep.subr.mxu0 0.0
  %215 = vmatpush1.msra.mxu0 0.0
  %216 = vmatprep.mubr.f32.mxu0 0.0
  %217 = vmatmul.mubr.f32.gmra.mrb[0].mxu0 %v147
  %v218 = vpop.f32.mrb[0].mxu0
  %v219 = vadd.f32 0.0, %v218
  %v220 = vpop.f32.mrb[0].mxu0
  %221 = vmatprep.mubr.f32.mxu0 0.0
  %222 = vmatmul.mubr.f32.gmra.mrb[0].mxu0 %v150
  %v223 = vpop.f32.mrb[0].mxu0
  %v224 = vadd.f32 0.0, %v223
  %v225 = vpop.f32.mrb[0].mxu0
  %226 = vdwg.mxu0
  %v227 = vld [vmem:[%s2 + $0x40] sm:$0xff]
  %v228 = vld [vmem:[%s2 + $0x48] sm:$0xff]
  %v229 = vld [vmem:[%s2 + $0x50] sm:$0xff]
  %v230 = vld [vmem:[%s2 + $0x58] sm:$0xff]
  %v231 = vld [vmem:[%s2 + $0x100] sm:$0x7]
  %v232 = vlaneseq
  %v233 = vshrl.u32 %v232, 7
  %v234 = vsub.s32 0, %v233
  %v235 = vrot.slane %v231, %v234
  %v237 = vsel %vm129, %v219, 0
  %v240 = vsel %vm129, %v224, 0
  %242 = vmatprep.subr.mxu0 0.0
  %243 = vmatpush1.msra.mxu0 %v227
  %244 = vmatprep.subr.mxu0 0.0
  %245 = vmatpush1.msra.mxu0 %v228
  %246 = vmatprep.subr.mxu0 0.0
  %247 = vmatpush1.msra.mxu0 %v229
  %248 = vmatprep.subr.mxu0 0.0
  %249 = vmatpush1.msra.mxu0 %v230
  %250 = vmatprep.subr.mxu0 0.0
  %251 = vmatpush1.msra.mxu0 0.0
  %252 = vmatprep.subr.mxu0 0.0
  %253 = vmatpush1.msra.mxu0 0.0
  %254 = vmatprep.subr.mxu0 0.0
  %255 = vmatpush1.msra.mxu0 0.0
  %256 = vmatprep.subr.mxu0 0.0
  %257 = vmatpush1.msra.mxu0 0.0
  %258 = vmatprep.subr.mxu0 0.0
  %259 = vmatpush1.msra.mxu0 0.0
  %260 = vmatprep.subr.mxu0 0.0
  %261 = vmatpush1.msra.mxu0 0.0
  %262 = vmatprep.subr.mxu0 0.0
  %263 = vmatpush1.msra.mxu0 0.0
  %264 = vmatprep.subr.mxu0 0.0
  %265 = vmatpush1.msra.mxu0 0.0
  %266 = vmatprep.subr.mxu0 0.0
  %267 = vmatpush1.msra.mxu0 0.0
  %268 = vmatprep.subr.mxu0 0.0
  %269 = vmatpush1.msra.mxu0 0.0
  %270 = vmatprep.subr.mxu0 0.0
  %271 = vmatpush1.msra.mxu0 0.0
  %272 = vmatprep.subr.mxu0 0.0
  %273 = vmatpush1.msra.mxu0 0.0
  %274 = vmatprep.subr.mxu0 0.0
  %275 = vmatpush1.msra.mxu0 0.0
  %276 = vmatprep.subr.mxu0 0.0
  %277 = vmatpush1.msra.mxu0 0.0
  %278 = vmatprep.subr.mxu0 0.0
  %279 = vmatpush1.msra.mxu0 0.0
  %280 = vmatprep.subr.mxu0 0.0
  %281 = vmatpush1.msra.mxu0 0.0
  %282 = vmatprep.subr.mxu0 0.0
  %283 = vmatpush1.msra.mxu0 0.0
  %284 = vmatprep.subr.mxu0 0.0
  %285 = vmatpush1.msra.mxu0 0.0
  %286 = vmatprep.subr.mxu0 0.0
  %287 = vmatpush1.msra.mxu0 0.0
  %288 = vmatprep.subr.mxu0 0.0
  %289 = vmatpush1.msra.mxu0 0.0
  %290 = vmatprep.subr.mxu0 0.0
  %291 = vmatpush1.msra.mxu0 0.0
  %292 = vmatprep.subr.mxu0 0.0
  %293 = vmatpush1.msra.mxu0 0.0
  %294 = vmatprep.subr.mxu0 0.0
  %295 = vmatpush1.msra.mxu0 0.0
  %296 = vmatprep.subr.mxu0 0.0
  %297 = vmatpush1.msra.mxu0 0.0
  %298 = vmatprep.subr.mxu0 0.0
  %299 = vmatpush1.msra.mxu0 0.0
  %300 = vmatprep.subr.mxu0 0.0
  %301 = vmatpush1.msra.mxu0 0.0
  %302 = vmatprep.subr.mxu0 0.0
  %303 = vmatpush1.msra.mxu0 0.0
  %304 = vmatprep.subr.mxu0 0.0
  %305 = vmatpush1.msra.mxu0 0.0
  %306 = vmatprep.mubr.f32.mxu0 0.0
  %307 = vmatmul.mubr.f32.gmra.mrb[0].mxu0 %v237
  %v308 = vpop.f32.mrb[0].mxu0
  %v309 = vadd.f32 %v235, %v308
  %v310 = vpop.f32.mrb[0].mxu0
  %311 = vmatprep.mubr.f32.mxu0 0.0
  %312 = vmatmul.mubr.f32.gmra.mrb[0].mxu0 %v240
  %v313 = vpop.f32.mrb[0].mxu0
  %v314 = vadd.f32 %v235, %v313
  %v315 = vpop.f32.mrb[0].mxu0
  %316 = vdwg.mxu0
  %v317 = vmul.f32 %v309, %v309
  %v318 = vmul.f32 %v314, %v314
  %v319 = vsel %vm129, %v317, 0.0
  %320 = vadd.xlane.f32.xlu0 %v319
  %v321 = vpop.xlane.xlu0 %320
  %v322 = vsel %vm129, %v318, 0.0
  %323 = vadd.xlane.f32.xlu0 %v322
  %v324 = vpop.xlane.xlu0 %323
  %v325 = vrcp.pop 32.0
  %v326 = vmul.f32 %v321, %v325
  %v327 = vmul.f32 %v324, %v325
  %v328 = vadd.f32 %v326, 1e-05
  %v329 = vadd.f32 %v327, 1e-05
  %v330 = vrsqrt.pop %v328
  %v331 = vrsqrt.pop %v329
  %v332 = vmul.f32 %v309, %v330
  %v333 = vmul.f32 %v314, %v331
  %v334 = vlaneseq
  %v335 = vshrl.u32 %v334, 7
  %v336 = vsub.s32 1, %v335
  %v337 = vrot.slane %v231, %v336
  %v338 = vmul.f32 %v332, %v337
  %v339 = vmul.f32 %v333, %v337
  %v340 = vlaneseq
  %v341 = vshrl.u32 %v340, 7
  %v342 = vsub.s32 2, %v341
  %v343 = vrot.slane %v231, %v342
  %v344 = vadd.f32 %v338, %v343
  %v345 = vadd.f32 %v339, %v343
  %v346 = vmax.f32 %v344, 0.0
  %v347 = vmax.f32 %v345, 0.0
  %v348 = vld [vmem:[%s2 + $0x60] sm:$0xff]
  %v349 = vld [vmem:[%s2 + $0x68] sm:$0xff]
  %v350 = vld [vmem:[%s2 + $0x70] sm:$0xff]
  %v351 = vld [vmem:[%s2 + $0x78] sm:$0xff]
  %v352 = vld [vmem:[%s2 + $0x108] sm:$0x7]
  %v353 = vlaneseq
  %v354 = vshrl.u32 %v353, 7
  %v355 = vsub.s32 0, %v354
  %v356 = vrot.slane %v352, %v355
  %v358 = vsel %vm129, %v346, 0
  %v361 = vsel %vm129, %v347, 0
  %363 = vmatprep.subr.mxu0 0.0
  %364 = vmatpush1.msra.mxu0 %v348
  %365 = vmatprep.subr.mxu0 0.0
  %366 = vmatpush1.msra.mxu0 %v349
  %367 = vmatprep.subr.mxu0 0.0
  %368 = vmatpush1.msra.mxu0 %v350
  %369 = vmatprep.subr.mxu0 0.0
  %370 = vmatpush1.msra.mxu0 %v351
  %371 = vmatprep.subr.mxu0 0.0
  %372 = vmatpush1.msra.mxu0 0.0
  %373 = vmatprep.subr.mxu0 0.0
  %374 = vmatpush1.msra.mxu0 0.0
  %375 = vmatprep.subr.mxu0 0.0
  %376 = vmatpush1.msra.mxu0 0.0
  %377 = vmatprep.subr.mxu0 0.0
  %378 = vmatpush1.msra.mxu0 0.0
  %379 = vmatprep.subr.mxu0 0.0
  %380 = vmatpush1.msra.mxu0 0.0
  %381 = vmatprep.subr.mxu0 0.0
  %382 = vmatpush1.msra.mxu0 0.0
  %383 = vmatprep.subr.mxu0 0.0
  %384 = vmatpush1.msra.mxu0 0.0
  %385 = vmatprep.subr.mxu0 0.0
  %386 = vmatpush1.msra.mxu0 0.0
  %387 = vmatprep.subr.mxu0 0.0
  %388 = vmatpush1.msra.mxu0 0.0
  %389 = vmatprep.subr.mxu0 0.0
  %390 = vmatpush1.msra.mxu0 0.0
  %391 = vmatprep.subr.mxu0 0.0
  %392 = vmatpush1.msra.mxu0 0.0
  %393 = vmatprep.subr.mxu0 0.0
  %394 = vmatpush1.msra.mxu0 0.0
  %395 = vmatprep.subr.mxu0 0.0
  %396 = vmatpush1.msra.mxu0 0.0
  %397 = vmatprep.subr.mxu0 0.0
  %398 = vmatpush1.msra.mxu0 0.0
  %399 = vmatprep.subr.mxu0 0.0
  %400 = vmatpush1.msra.mxu0 0.0
  %401 = vmatprep.subr.mxu0 0.0
  %402 = vmatpush1.msra.mxu0 0.0
  %403 = vmatprep.subr.mxu0 0.0
  %404 = vmatpush1.msra.mxu0 0.0
  %405 = vmatprep.subr.mxu0 0.0
  %406 = vmatpush1.msra.mxu0 0.0
  %407 = vmatprep.subr.mxu0 0.0
  %408 = vmatpush1.msra.mxu0 0.0
  %409 = vmatprep.subr.mxu0 0.0
  %410 = vmatpush1.msra.mxu0 0.0
  %411 = vmatprep.subr.mxu0 0.0
  %412 = vmatpush1.msra.mxu0 0.0
  %413 = vmatprep.subr.mxu0 0.0
  %414 = vmatpush1.msra.mxu0 0.0
  %415 = vmatprep.subr.mxu0 0.0
  %416 = vmatpush1.msra.mxu0 0.0
  %417 = vmatprep.subr.mxu0 0.0
  %418 = vmatpush1.msra.mxu0 0.0
  %419 = vmatprep.subr.mxu0 0.0
  %420 = vmatpush1.msra.mxu0 0.0
  %421 = vmatprep.subr.mxu0 0.0
  %422 = vmatpush1.msra.mxu0 0.0
  %423 = vmatprep.subr.mxu0 0.0
  %424 = vmatpush1.msra.mxu0 0.0
  %425 = vmatprep.subr.mxu0 0.0
  %426 = vmatpush1.msra.mxu0 0.0
  %427 = vmatprep.mubr.f32.mxu0 0.0
  %428 = vmatmul.mubr.f32.gmra.mrb[0].mxu0 %v358
  %v429 = vpop.f32.mrb[0].mxu0
  %v430 = vadd.f32 %v356, %v429
  %v431 = vpop.f32.mrb[0].mxu0
  %432 = vmatprep.mubr.f32.mxu0 0.0
  %433 = vmatmul.mubr.f32.gmra.mrb[0].mxu0 %v361
  %v434 = vpop.f32.mrb[0].mxu0
  %v435 = vadd.f32 %v356, %v434
  %v436 = vpop.f32.mrb[0].mxu0
  %437 = vdwg.mxu0
  %v438 = vmul.f32 %v430, %v430
  %v439 = vmul.f32 %v435, %v435
  %v440 = vsel %vm129, %v438, 0.0
  %441 = vadd.xlane.f32.xlu0 %v440
  %v442 = vpop.xlane.xlu0 %441
  %v443 = vsel %vm129, %v439, 0.0
  %444 = vadd.xlane.f32.xlu0 %v443
  %v445 = vpop.xlane.xlu0 %444
  %v446 = vmul.f32 %v442, %v325
  %v447 = vmul.f32 %v445, %v325
  %v448 = vadd.f32 %v446, 1e-05
  %v449 = vadd.f32 %v447, 1e-05
  %v450 = vrsqrt.pop %v448
  %v451 = vrsqrt.pop %v449
  %v452 = vmul.f32 %v430, %v450
  %v453 = vmul.f32 %v435, %v451
  %v454 = vlaneseq
  %v455 = vshrl.u32 %v454, 7
  %v456 = vsub.s32 1, %v455
  %v457 = vrot.slane %v352, %v456
  %v458 = vmul.f32 %v452, %v457
  %v459 = vmul.f32 %v453, %v457
  %v460 = vlaneseq
  %v461 = vshrl.u32 %v460, 7
  %v462 = vsub.s32 2, %v461
  %v463 = vrot.slane %v352, %v462
  %v464 = vadd.f32 %v458, %v463
  %v465 = vadd.f32 %v459, %v463
  %v466 = vmax.f32 %v464, 0.0
  %v467 = vmax.f32 %v465, 0.0
  %v468 = vld [vmem:[%s2 + $0x80] sm:$0xff]
  %v469 = vld [vmem:[%s2 + $0x88] sm:$0xff]
  %v470 = vld [vmem:[%s2 + $0x90] sm:$0xff]
  %v471 = vld [vmem:[%s2 + $0x98] sm:$0xff]
  %v472 = vld [vmem:[%s2 + $0x110] sm:$0x7]
  %v473 = vlaneseq
  %v474 = vshrl.u32 %v473, 7
  %v475 = vsub.s32 0, %v474
  %v476 = vrot.slane %v472, %v475
  %v478 = vsel %vm129, %v466, 0
  %v481 = vsel %vm129, %v467, 0
  %483 = vmatprep.subr.mxu0 0.0
  %484 = vmatpush1.msra.mxu0 %v468
  %485 = vmatprep.subr.mxu0 0.0
  %486 = vmatpush1.msra.mxu0 %v469
  %487 = vmatprep.subr.mxu0 0.0
  %488 = vmatpush1.msra.mxu0 %v470
  %489 = vmatprep.subr.mxu0 0.0
  %490 = vmatpush1.msra.mxu0 %v471
  %491 = vmatprep.subr.mxu0 0.0
  %492 = vmatpush1.msra.mxu0 0.0
  %493 = vmatprep.subr.mxu0 0.0
  %494 = vmatpush1.msra.mxu0 0.0
  %495 = vmatprep.subr.mxu0 0.0
  %496 = vmatpush1.msra.mxu0 0.0
  %497 = vmatprep.subr.mxu0 0.0
  %498 = vmatpush1.msra.mxu0 0.0
  %499 = vmatprep.subr.mxu0 0.0
  %500 = vmatpush1.msra.mxu0 0.0
  %501 = vmatprep.subr.mxu0 0.0
  %502 = vmatpush1.msra.mxu0 0.0
  %503 = vmatprep.subr.mxu0 0.0
  %504 = vmatpush1.msra.mxu0 0.0
  %505 = vmatprep.subr.mxu0 0.0
  %506 = vmatpush1.msra.mxu0 0.0
  %507 = vmatprep.subr.mxu0 0.0
  %508 = vmatpush1.msra.mxu0 0.0
  %509 = vmatprep.subr.mxu0 0.0
  %510 = vmatpush1.msra.mxu0 0.0
  %511 = vmatprep.subr.mxu0 0.0
  %512 = vmatpush1.msra.mxu0 0.0
  %513 = vmatprep.subr.mxu0 0.0
  %514 = vmatpush1.msra.mxu0 0.0
  %515 = vmatprep.subr.mxu0 0.0
  %516 = vmatpush1.msra.mxu0 0.0
  %517 = vmatprep.subr.mxu0 0.0
  %518 = vmatpush1.msra.mxu0 0.0
  %519 = vmatprep.subr.mxu0 0.0
  %520 = vmatpush1.msra.mxu0 0.0
  %521 = vmatprep.subr.mxu0 0.0
  %522 = vmatpush1.msra.mxu0 0.0
  %523 = vmatprep.subr.mxu0 0.0
  %524 = vmatpush1.msra.mxu0 0.0
  %525 = vmatprep.subr.mxu0 0.0
  %526 = vmatpush1.msra.mxu0 0.0
  %527 = vmatprep.subr.mxu0 0.0
  %528 = vmatpush1.msra.mxu0 0.0
  %529 = vmatprep.subr.mxu0 0.0
  %530 = vmatpush1.msra.mxu0 0.0
  %531 = vmatprep.subr.mxu0 0.0
  %532 = vmatpush1.msra.mxu0 0.0
  %533 = vmatprep.subr.mxu0 0.0
  %534 = vmatpush1.msra.mxu0 0.0
  %535 = vmatprep.subr.mxu0 0.0
  %536 = vmatpush1.msra.mxu0 0.0
  %537 = vmatprep.subr.mxu0 0.0
  %538 = vmatpush1.msra.mxu0 0.0
  %539 = vmatprep.subr.mxu0 0.0
  %540 = vmatpush1.msra.mxu0 0.0
  %541 = vmatprep.subr.mxu0 0.0
  %542 = vmatpush1.msra.mxu0 0.0
  %543 = vmatprep.subr.mxu0 0.0
  %544 = vmatpush1.msra.mxu0 0.0
  %545 = vmatprep.subr.mxu0 0.0
  %546 = vmatpush1.msra.mxu0 0.0
  %547 = vmatprep.mubr.f32.mxu0 0.0
  %548 = vmatmul.mubr.f32.gmra.mrb[0].mxu0 %v478
  %v549 = vpop.f32.mrb[0].mxu0
  %v550 = vadd.f32 %v476, %v549
  %v551 = vpop.f32.mrb[0].mxu0
  %552 = vmatprep.mubr.f32.mxu0 0.0
  %553 = vmatmul.mubr.f32.gmra.mrb[0].mxu0 %v481
  %v554 = vpop.f32.mrb[0].mxu0
  %v555 = vadd.f32 %v476, %v554
  %v556 = vpop.f32.mrb[0].mxu0
  %557 = vdwg.mxu0
  %v558 = vmul.f32 %v550, %v550
  %v559 = vmul.f32 %v555, %v555
  %v560 = vsel %vm129, %v558, 0.0
  %561 = vadd.xlane.f32.xlu0 %v560
  %v562 = vpop.xlane.xlu0 %561
  %v563 = vsel %vm129, %v559, 0.0
  %564 = vadd.xlane.f32.xlu0 %v563
  %v565 = vpop.xlane.xlu0 %564
  %v566 = vmul.f32 %v562, %v325
  %v567 = vmul.f32 %v565, %v325
  %v568 = vadd.f32 %v566, 1e-05
  %v569 = vadd.f32 %v567, 1e-05
  %v570 = vrsqrt.pop %v568
  %v571 = vrsqrt.pop %v569
  %v572 = vmul.f32 %v550, %v570
  %v573 = vmul.f32 %v555, %v571
  %v574 = vlaneseq
  %v575 = vshrl.u32 %v574, 7
  %v576 = vsub.s32 1, %v575
  %v577 = vrot.slane %v472, %v576
  %v578 = vmul.f32 %v572, %v577
  %v579 = vmul.f32 %v573, %v577
  %v580 = vlaneseq
  %v581 = vshrl.u32 %v580, 7
  %v582 = vsub.s32 2, %v581
  %v583 = vrot.slane %v472, %v582
  %v584 = vadd.f32 %v578, %v583
  %v585 = vadd.f32 %v579, %v583
  %v586 = vmax.f32 %v584, 0.0
  %v587 = vmax.f32 %v585, 0.0
  %v588 = vadd.f32 %v586, %v219
  %v589 = vadd.f32 %v587, %v224
  %v590 = vld [vmem:[%s2 + $0xa0] sm:$0xff]
  %v591 = vld [vmem:[%s2 + $0xa8] sm:$0xff]
  %v592 = vld [vmem:[%s2 + $0xb0] sm:$0xff]
  %v593 = vld [vmem:[%s2 + $0xb8] sm:$0xff]
  %v594 = vld [vmem:[%s2 + $0x118] sm:$0x7]
  %v595 = vlaneseq
  %v596 = vshrl.u32 %v595, 7
  %v597 = vsub.s32 0, %v596
  %v598 = vrot.slane %v594, %v597
  %v600 = vsel %vm129, %v588, 0
  %v603 = vsel %vm129, %v589, 0
  %605 = vmatprep.subr.mxu0 0.0
  %606 = vmatpush1.msra.mxu0 %v590
  %607 = vmatprep.subr.mxu0 0.0
  %608 = vmatpush1.msra.mxu0 %v591
  %609 = vmatprep.subr.mxu0 0.0
  %610 = vmatpush1.msra.mxu0 %v592
  %611 = vmatprep.subr.mxu0 0.0
  %612 = vmatpush1.msra.mxu0 %v593
  %613 = vmatprep.subr.mxu0 0.0
  %614 = vmatpush1.msra.mxu0 0.0
  %615 = vmatprep.subr.mxu0 0.0
  %616 = vmatpush1.msra.mxu0 0.0
  %617 = vmatprep.subr.mxu0 0.0
  %618 = vmatpush1.msra.mxu0 0.0
  %619 = vmatprep.subr.mxu0 0.0
  %620 = vmatpush1.msra.mxu0 0.0
  %621 = vmatprep.subr.mxu0 0.0
  %622 = vmatpush1.msra.mxu0 0.0
  %623 = vmatprep.subr.mxu0 0.0
  %624 = vmatpush1.msra.mxu0 0.0
  %625 = vmatprep.subr.mxu0 0.0
  %626 = vmatpush1.msra.mxu0 0.0
  %627 = vmatprep.subr.mxu0 0.0
  %628 = vmatpush1.msra.mxu0 0.0
  %629 = vmatprep.subr.mxu0 0.0
  %630 = vmatpush1.msra.mxu0 0.0
  %631 = vmatprep.subr.mxu0 0.0
  %632 = vmatpush1.msra.mxu0 0.0
  %633 = vmatprep.subr.mxu0 0.0
  %634 = vmatpush1.msra.mxu0 0.0
  %635 = vmatprep.subr.mxu0 0.0
  %636 = vmatpush1.msra.mxu0 0.0
  %637 = vmatprep.subr.mxu0 0.0
  %638 = vmatpush1.msra.mxu0 0.0
  %639 = vmatprep.subr.mxu0 0.0
  %640 = vmatpush1.msra.mxu0 0.0
  %641 = vmatprep.subr.mxu0 0.0
  %642 = vmatpush1.msra.mxu0 0.0
  %643 = vmatprep.subr.mxu0 0.0
  %644 = vmatpush1.msra.mxu0 0.0
  %645 = vmatprep.subr.mxu0 0.0
  %646 = vmatpush1.msra.mxu0 0.0
  %647 = vmatprep.subr.mxu0 0.0
  %648 = vmatpush1.msra.mxu0 0.0
  %649 = vmatprep.subr.mxu0 0.0
  %650 = vmatpush1.msra.mxu0 0.0
  %651 = vmatprep.subr.mxu0 0.0
  %652 = vmatpush1.msra.mxu0 0.0
  %653 = vmatprep.subr.mxu0 0.0
  %654 = vmatpush1.msra.mxu0 0.0
  %655 = vmatprep.subr.mxu0 0.0
  %656 = vmatpush1.msra.mxu0 0.0
  %657 = vmatprep.subr.mxu0 0.0
  %658 = vmatpush1.msra.mxu0 0.0
  %659 = vmatprep.subr.mxu0 0.0
  %660 = vmatpush1.msra.mxu0 0.0
  %661 = vmatprep.subr.mxu0 0.0
  %662 = vmatpush1.msra.mxu0 0.0
  %663 = vmatprep.subr.mxu0 0.0
  %664 = vmatpush1.msra.mxu0 0.0
  %665 = vmatprep.subr.mxu0 0.0
  %666 = vmatpush1.msra.mxu0 0.0
  %667 = vmatprep.subr.mxu0 0.0
  %668 = vmatpush1.msra.mxu0 0.0
  %669 = vmatprep.mubr.f32.mxu0 0.0
  %670 = vmatmul.mubr.f32.gmra.mrb[0].mxu0 %v600
  %v671 = vpop.f32.mrb[0].mxu0
  %v672 = vadd.f32 %v598, %v671
  %v673 = vpop.f32.mrb[0].mxu0
  %674 = vmatprep.mubr.f32.mxu0 0.0
  %675 = vmatmul.mubr.f32.gmra.mrb[0].mxu0 %v603
  %v676 = vpop.f32.mrb[0].mxu0
  %v677 = vadd.f32 %v598, %v676
  %v678 = vpop.f32.mrb[0].mxu0
  %679 = vdwg.mxu0
  %v680 = vmul.f32 %v672, %v672
  %v681 = vmul.f32 %v677, %v677
  %v682 = vsel %vm129, %v680, 0.0
  %683 = vadd.xlane.f32.xlu0 %v682
  %v684 = vpop.xlane.xlu0 %683
  %v685 = vsel %vm129, %v681, 0.0
  %686 = vadd.xlane.f32.xlu0 %v685
  %v687 = vpop.xlane.xlu0 %686
  %v688 = vmul.f32 %v684, %v325
  %v689 = vmul.f32 %v687, %v325
  %v690 = vadd.f32 %v688, 1e-05
  %v691 = vadd.f32 %v689, 1e-05
  %v692 = vrsqrt.pop %v690
  %v693 = vrsqrt.pop %v691
  %v694 = vmul.f32 %v672, %v692
  %v695 = vmul.f32 %v677, %v693
  %v696 = vlaneseq
  %v697 = vshrl.u32 %v696, 7
  %v698 = vsub.s32 1, %v697
  %v699 = vrot.slane %v594, %v698
  %v700 = vmul.f32 %v694, %v699
  %v701 = vmul.f32 %v695, %v699
  %v702 = vlaneseq
  %v703 = vshrl.u32 %v702, 7
  %v704 = vsub.s32 2, %v703
  %v705 = vrot.slane %v594, %v704
  %v706 = vadd.f32 %v700, %v705
  %v707 = vadd.f32 %v701, %v705
  %v708 = vmax.f32 %v706, 0.0
  %v709 = vmax.f32 %v707, 0.0
  %v710 = vld [vmem:[%s2 + $0xc0] sm:$0xff]
  %v711 = vld [vmem:[%s2 + $0xc8] sm:$0xff]
  %v712 = vld [vmem:[%s2 + $0xd0] sm:$0xff]
  %v713 = vld [vmem:[%s2 + $0xd8] sm:$0xff]
  %v714 = vld [vmem:[%s2 + $0x120] sm:$0x7]
  %v715 = vlaneseq
  %v716 = vshrl.u32 %v715, 7
  %v717 = vsub.s32 0, %v716
  %v718 = vrot.slane %v714, %v717
  %v720 = vsel %vm129, %v708, 0
  %v723 = vsel %vm129, %v709, 0
  %725 = vmatprep.subr.mxu0 0.0
  %726 = vmatpush1.msra.mxu0 %v710
  %727 = vmatprep.subr.mxu0 0.0
  %728 = vmatpush1.msra.mxu0 %v711
  %729 = vmatprep.subr.mxu0 0.0
  %730 = vmatpush1.msra.mxu0 %v712
  %731 = vmatprep.subr.mxu0 0.0
  %732 = vmatpush1.msra.mxu0 %v713
  %733 = vmatprep.subr.mxu0 0.0
  %734 = vmatpush1.msra.mxu0 0.0
  %735 = vmatprep.subr.mxu0 0.0
  %736 = vmatpush1.msra.mxu0 0.0
  %737 = vmatprep.subr.mxu0 0.0
  %738 = vmatpush1.msra.mxu0 0.0
  %739 = vmatprep.subr.mxu0 0.0
  %740 = vmatpush1.msra.mxu0 0.0
  %741 = vmatprep.subr.mxu0 0.0
  %742 = vmatpush1.msra.mxu0 0.0
  %743 = vmatprep.subr.mxu0 0.0
  %744 = vmatpush1.msra.mxu0 0.0
  %745 = vmatprep.subr.mxu0 0.0
  %746 = vmatpush1.msra.mxu0 0.0
  %747 = vmatprep.subr.mxu0 0.0
  %748 = vmatpush1.msra.mxu0 0.0
  %749 = vmatprep.subr.mxu0 0.0
  %750 = vmatpush1.msra.mxu0 0.0
  %751 = vmatprep.subr.mxu0 0.0
  %752 = vmatpush1.msra.mxu0 0.0
  %753 = vmatprep.subr.mxu0 0.0
  %754 = vmatpush1.msra.mxu0 0.0
  %755 = vmatprep.subr.mxu0 0.0
  %756 = vmatpush1.msra.mxu0 0.0
  %757 = vmatprep.subr.mxu0 0.0
  %758 = vmatpush1.msra.mxu0 0.0
  %759 = vmatprep.subr.mxu0 0.0
  %760 = vmatpush1.msra.mxu0 0.0
  %761 = vmatprep.subr.mxu0 0.0
  %762 = vmatpush1.msra.mxu0 0.0
  %763 = vmatprep.subr.mxu0 0.0
  %764 = vmatpush1.msra.mxu0 0.0
  %765 = vmatprep.subr.mxu0 0.0
  %766 = vmatpush1.msra.mxu0 0.0
  %767 = vmatprep.subr.mxu0 0.0
  %768 = vmatpush1.msra.mxu0 0.0
  %769 = vmatprep.subr.mxu0 0.0
  %770 = vmatpush1.msra.mxu0 0.0
  %771 = vmatprep.subr.mxu0 0.0
  %772 = vmatpush1.msra.mxu0 0.0
  %773 = vmatprep.subr.mxu0 0.0
  %774 = vmatpush1.msra.mxu0 0.0
  %775 = vmatprep.subr.mxu0 0.0
  %776 = vmatpush1.msra.mxu0 0.0
  %777 = vmatprep.subr.mxu0 0.0
  %778 = vmatpush1.msra.mxu0 0.0
  %779 = vmatprep.subr.mxu0 0.0
  %780 = vmatpush1.msra.mxu0 0.0
  %781 = vmatprep.subr.mxu0 0.0
  %782 = vmatpush1.msra.mxu0 0.0
  %783 = vmatprep.subr.mxu0 0.0
  %784 = vmatpush1.msra.mxu0 0.0
  %785 = vmatprep.subr.mxu0 0.0
  %786 = vmatpush1.msra.mxu0 0.0
  %787 = vmatprep.subr.mxu0 0.0
  %788 = vmatpush1.msra.mxu0 0.0
  %789 = vmatprep.mubr.f32.mxu0 0.0
  %790 = vmatmul.mubr.f32.gmra.mrb[0].mxu0 %v720
  %v791 = vpop.f32.mrb[0].mxu0
  %v792 = vadd.f32 %v718, %v791
  %v793 = vpop.f32.mrb[0].mxu0
  %794 = vmatprep.mubr.f32.mxu0 0.0
  %795 = vmatmul.mubr.f32.gmra.mrb[0].mxu0 %v723
  %v796 = vpop.f32.mrb[0].mxu0
  %v797 = vadd.f32 %v718, %v796
  %v798 = vpop.f32.mrb[0].mxu0
  %799 = vdwg.mxu0
  %v800 = vmul.f32 %v792, %v792
  %v801 = vmul.f32 %v797, %v797
  %v802 = vsel %vm129, %v800, 0.0
  %803 = vadd.xlane.f32.xlu0 %v802
  %v804 = vpop.xlane.xlu0 %803
  %v805 = vsel %vm129, %v801, 0.0
  %806 = vadd.xlane.f32.xlu0 %v805
  %v807 = vpop.xlane.xlu0 %806
  %v808 = vmul.f32 %v804, %v325
  %v809 = vmul.f32 %v807, %v325
  %v810 = vadd.f32 %v808, 1e-05
  %v811 = vadd.f32 %v809, 1e-05
  %v812 = vrsqrt.pop %v810
  %v813 = vrsqrt.pop %v811
  %v814 = vmul.f32 %v792, %v812
  %v815 = vmul.f32 %v797, %v813
  %v816 = vlaneseq
  %v817 = vshrl.u32 %v816, 7
  %v818 = vsub.s32 1, %v817
  %v819 = vrot.slane %v714, %v818
  %v820 = vmul.f32 %v814, %v819
  %v821 = vmul.f32 %v815, %v819
  %v822 = vlaneseq
  %v823 = vshrl.u32 %v822, 7
  %v824 = vsub.s32 2, %v823
  %v825 = vrot.slane %v714, %v824
  %v826 = vadd.f32 %v820, %v825
  %v827 = vadd.f32 %v821, %v825
  %v828 = vmax.f32 %v826, 0.0
  %v829 = vmax.f32 %v827, 0.0
  %v830 = vld [vmem:[%s2 + $0xe0] sm:$0xff]
  %v831 = vld [vmem:[%s2 + $0xe8] sm:$0xff]
  %v832 = vld [vmem:[%s2 + $0xf0] sm:$0xff]
  %v833 = vld [vmem:[%s2 + $0xf8] sm:$0xff]
  %v834 = vld [vmem:[%s2 + $0x128] sm:$0x7]
  %v835 = vlaneseq
  %v836 = vshrl.u32 %v835, 7
  %v837 = vsub.s32 0, %v836
  %v838 = vrot.slane %v834, %v837
  %v840 = vsel %vm129, %v828, 0
  %v843 = vsel %vm129, %v829, 0
  %845 = vmatprep.subr.mxu0 0.0
  %846 = vmatpush1.msra.mxu0 %v830
  %847 = vmatprep.subr.mxu0 0.0
  %848 = vmatpush1.msra.mxu0 %v831
  %849 = vmatprep.subr.mxu0 0.0
  %850 = vmatpush1.msra.mxu0 %v832
  %851 = vmatprep.subr.mxu0 0.0
  %852 = vmatpush1.msra.mxu0 %v833
  %853 = vmatprep.subr.mxu0 0.0
  %854 = vmatpush1.msra.mxu0 0.0
  %855 = vmatprep.subr.mxu0 0.0
  %856 = vmatpush1.msra.mxu0 0.0
  %857 = vmatprep.subr.mxu0 0.0
  %858 = vmatpush1.msra.mxu0 0.0
  %859 = vmatprep.subr.mxu0 0.0
  %860 = vmatpush1.msra.mxu0 0.0
  %861 = vmatprep.subr.mxu0 0.0
  %862 = vmatpush1.msra.mxu0 0.0
  %863 = vmatprep.subr.mxu0 0.0
  %864 = vmatpush1.msra.mxu0 0.0
  %865 = vmatprep.subr.mxu0 0.0
  %866 = vmatpush1.msra.mxu0 0.0
  %867 = vmatprep.subr.mxu0 0.0
  %868 = vmatpush1.msra.mxu0 0.0
  %869 = vmatprep.subr.mxu0 0.0
  %870 = vmatpush1.msra.mxu0 0.0
  %871 = vmatprep.subr.mxu0 0.0
  %872 = vmatpush1.msra.mxu0 0.0
  %873 = vmatprep.subr.mxu0 0.0
  %874 = vmatpush1.msra.mxu0 0.0
  %875 = vmatprep.subr.mxu0 0.0
  %876 = vmatpush1.msra.mxu0 0.0
  %877 = vmatprep.subr.mxu0 0.0
  %878 = vmatpush1.msra.mxu0 0.0
  %879 = vmatprep.subr.mxu0 0.0
  %880 = vmatpush1.msra.mxu0 0.0
  %881 = vmatprep.subr.mxu0 0.0
  %882 = vmatpush1.msra.mxu0 0.0
  %883 = vmatprep.subr.mxu0 0.0
  %884 = vmatpush1.msra.mxu0 0.0
  %885 = vmatprep.subr.mxu0 0.0
  %886 = vmatpush1.msra.mxu0 0.0
  %887 = vmatprep.subr.mxu0 0.0
  %888 = vmatpush1.msra.mxu0 0.0
  %889 = vmatprep.subr.mxu0 0.0
  %890 = vmatpush1.msra.mxu0 0.0
  %891 = vmatprep.subr.mxu0 0.0
  %892 = vmatpush1.msra.mxu0 0.0
  %893 = vmatprep.subr.mxu0 0.0
  %894 = vmatpush1.msra.mxu0 0.0
  %895 = vmatprep.subr.mxu0 0.0
  %896 = vmatpush1.msra.mxu0 0.0
  %897 = vmatprep.subr.mxu0 0.0
  %898 = vmatpush1.msra.mxu0 0.0
  %899 = vmatprep.subr.mxu0 0.0
  %900 = vmatpush1.msra.mxu0 0.0
  %901 = vmatprep.subr.mxu0 0.0
  %902 = vmatpush1.msra.mxu0 0.0
  %903 = vmatprep.subr.mxu0 0.0
  %904 = vmatpush1.msra.mxu0 0.0
  %905 = vmatprep.subr.mxu0 0.0
  %906 = vmatpush1.msra.mxu0 0.0
  %907 = vmatprep.subr.mxu0 0.0
  %908 = vmatpush1.msra.mxu0 0.0
  %909 = vmatprep.mubr.f32.mxu0 0.0
  %910 = vmatmul.mubr.f32.gmra.mrb[0].mxu0 %v840
  %v911 = vpop.f32.mrb[0].mxu0
  %v912 = vadd.f32 %v838, %v911
  %v913 = vpop.f32.mrb[0].mxu0
  %914 = vmatprep.mubr.f32.mxu0 0.0
  %915 = vmatmul.mubr.f32.gmra.mrb[0].mxu0 %v843
  %v916 = vpop.f32.mrb[0].mxu0
  %v917 = vadd.f32 %v838, %v916
  %v918 = vpop.f32.mrb[0].mxu0
  %919 = vdwg.mxu0
  %v920 = vmul.f32 %v912, %v912
  %v921 = vmul.f32 %v917, %v917
  %v922 = vsel %vm129, %v920, 0.0
  %923 = vadd.xlane.f32.xlu0 %v922
  %v924 = vpop.xlane.xlu0 %923
  %v925 = vsel %vm129, %v921, 0.0
  %926 = vadd.xlane.f32.xlu0 %v925
  %v927 = vpop.xlane.xlu0 %926
  %v928 = vmul.f32 %v924, %v325
  %v929 = vmul.f32 %v927, %v325
  %v930 = vadd.f32 %v928, 1e-05
  %v931 = vadd.f32 %v929, 1e-05
  %v932 = vrsqrt.pop %v930
  %v933 = vrsqrt.pop %v931
  %v934 = vmul.f32 %v912, %v932
  %v935 = vmul.f32 %v917, %v933
  %v936 = vlaneseq
  %v937 = vshrl.u32 %v936, 7
  %v938 = vsub.s32 1, %v937
  %v939 = vrot.slane %v834, %v938
  %v940 = vmul.f32 %v934, %v939
  %v941 = vmul.f32 %v935, %v939
  %v942 = vlaneseq
  %v943 = vshrl.u32 %v942, 7
  %v944 = vsub.s32 2, %v943
  %v945 = vrot.slane %v834, %v944
  %v946 = vadd.f32 %v940, %v945
  %v947 = vadd.f32 %v941, %v945
  %v948 = vmax.f32 %v946, 0.0
  %v949 = vmax.f32 %v947, 0.0
  %v950 = vadd.f32 %v948, %v588
  %v951 = vadd.f32 %v949, %v589
  %v952 = vsub.f32 %v17, %v950
  %v953 = vsub.f32 %v18, %v951
  %954 = vst.msk [vmem:[#allocation2] sm:$0xff] %vm129, %v950
  %955 = vst.msk [vmem:[#allocation2 + $0x8] sm:$0xff] %vm129, %v951
  %958 = vrot.lane.b32.xlu0 %v952, 32
  %v959 = vpop.permute.xlu0 %958
  %960 = vrot.lane.b32.xlu0 %v953, 32
  %v961 = vpop.permute.xlu0 %960
  %964 = vst.msk [vmem:[#allocation2] sm:$0xff] %vm140, %v959
  %965 = vst.msk [vmem:[#allocation2 + $0x8] sm:$0xff] %vm140, %v961
  %v966 = vld [vmem:[#allocation2] sm:$0xff]
  %v967 = vld [vmem:[#allocation2 + $0x8] sm:$0xff]
  %v968 = vld [vmem:[%s3] sm:$0xff]
  %v969 = vld [vmem:[%s3 + $0x8] sm:$0xff]
  %v970 = vld [vmem:[%s3 + $0x10] sm:$0xff]
  %v971 = vld [vmem:[%s3 + $0x18] sm:$0xff]
  %v972 = vld [vmem:[%s3 + $0x20] sm:$0xff]
  %v973 = vld [vmem:[%s3 + $0x28] sm:$0xff]
  %v974 = vld [vmem:[%s3 + $0x30] sm:$0xff]
  %v975 = vld [vmem:[%s3 + $0x38] sm:$0xff]
  %v976 = vld [vmem:[%s3 + $0x40] sm:$0xff]
  %v977 = vld [vmem:[%s3 + $0x48] sm:$0xff]
  %v978 = vld [vmem:[%s3 + $0x50] sm:$0xff]
  %v979 = vld [vmem:[%s3 + $0x58] sm:$0xff]
  %v980 = vld [vmem:[%s3 + $0x60] sm:$0xff]
  %v981 = vld [vmem:[%s3 + $0x68] sm:$0xff]
  %v982 = vld [vmem:[%s3 + $0x70] sm:$0xff]
  %v983 = vld [vmem:[%s3 + $0x78] sm:$0xff]
  %984 = vmatprep.subr.mxu0 0.0
  %985 = vmatpush1.msra.mxu0 %v966
  %986 = vmatprep.subr.mxu0 0.0
  %987 = vmatpush1.msra.mxu0 %v967
  %988 = vmatprep.subr.mxu0 0.0
  %989 = vmatpush1.msra.mxu0 0.0
  %990 = vmatprep.subr.mxu0 0.0
  %991 = vmatpush1.msra.mxu0 0.0
  %992 = vmatprep.subr.mxu0 0.0
  %993 = vmatpush1.msra.mxu0 0.0
  %994 = vmatprep.subr.mxu0 0.0
  %995 = vmatpush1.msra.mxu0 0.0
  %996 = vmatprep.subr.mxu0 0.0
  %997 = vmatpush1.msra.mxu0 0.0
  %998 = vmatprep.subr.mxu0 0.0
  %999 = vmatpush1.msra.mxu0 0.0
  %1000 = vmatprep.subr.mxu0 0.0
  %1001 = vmatpush1.msra.mxu0 0.0
  %1002 = vmatprep.subr.mxu0 0.0
  %1003 = vmatpush1.msra.mxu0 0.0
  %1004 = vmatprep.subr.mxu0 0.0
  %1005 = vmatpush1.msra.mxu0 0.0
  %1006 = vmatprep.subr.mxu0 0.0
  %1007 = vmatpush1.msra.mxu0 0.0
  %1008 = vmatprep.subr.mxu0 0.0
  %1009 = vmatpush1.msra.mxu0 0.0
  %1010 = vmatprep.subr.mxu0 0.0
  %1011 = vmatpush1.msra.mxu0 0.0
  %1012 = vmatprep.subr.mxu0 0.0
  %1013 = vmatpush1.msra.mxu0 0.0
  %1014 = vmatprep.subr.mxu0 0.0
  %1015 = vmatpush1.msra.mxu0 0.0
  %1016 = vmatprep.subr.mxu0 0.0
  %1017 = vmatpush1.msra.mxu0 0.0
  %1018 = vmatprep.subr.mxu0 0.0
  %1019 = vmatpush1.msra.mxu0 0.0
  %1020 = vmatprep.subr.mxu0 0.0
  %1021 = vmatpush1.msra.mxu0 0.0
  %1022 = vmatprep.subr.mxu0 0.0
  %1023 = vmatpush1.msra.mxu0 0.0
  %1024 = vmatprep.subr.mxu0 0.0
  %1025 = vmatpush1.msra.mxu0 0.0
  %1026 = vmatprep.subr.mxu0 0.0
  %1027 = vmatpush1.msra.mxu0 0.0
  %1028 = vmatprep.subr.mxu0 0.0
  %1029 = vmatpush1.msra.mxu0 0.0
  %1030 = vmatprep.subr.mxu0 0.0
  %1031 = vmatpush1.msra.mxu0 0.0
  %1032 = vmatprep.subr.mxu0 0.0
  %1033 = vmatpush1.msra.mxu0 0.0
  %1034 = vmatprep.subr.mxu0 0.0
  %1035 = vmatpush1.msra.mxu0 0.0
  %1036 = vmatprep.subr.mxu0 0.0
  %1037 = vmatpush1.msra.mxu0 0.0
  %1038 = vmatprep.subr.mxu0 0.0
  %1039 = vmatpush1.msra.mxu0 0.0
  %1040 = vmatprep.subr.mxu0 0.0
  %1041 = vmatpush1.msra.mxu0 0.0
  %1042 = vmatprep.subr.mxu0 0.0
  %1043 = vmatpush1.msra.mxu0 0.0
  %1044 = vmatprep.subr.mxu0 0.0
  %1045 = vmatpush1.msra.mxu0 0.0
  %1046 = vmatprep.subr.mxu0 0.0
  %1047 = vmatpush1.msra.mxu0 0.0
  %1048 = vmatprep.mubr.f32.mxu0 0.0
  %1049 = vmatmul.mubr.f32.gmra.mrb[0].mxu0 %v33
  %v1050 = vpop.f32.mrb[0].mxu0
  %v1051 = vadd.f32 0.0, %v1050
  %v1052 = vpop.f32.mrb[0].mxu0
  %1053 = vmatprep.mubr.f32.mxu0 0.0
  %1054 = vmatmul.mubr.f32.gmra.mrb[0].mxu0 %v36
  %v1055 = vpop.f32.mrb[0].mxu0
  %v1056 = vadd.f32 0.0, %v1055
  %v1057 = vpop.f32.mrb[0].mxu0
  %1058 = vmatprep.mubr.f32.mxu0 0.0
  %1059 = vmatmul.mubr.f32.gmra.mrb[0].mxu0 %v39
  %v1060 = vpop.f32.mrb[0].mxu0
  %v1061 = vadd.f32 0.0, %v1060
  %v1062 = vpop.f32.mrb[0].mxu0
  %1063 = vmatprep.mubr.f32.mxu0 0.0
  %1064 = vmatmul.mubr.f32.gmra.mrb[0].mxu0 %v42
  %v1065 = vpop.f32.mrb[0].mxu0
  %v1066 = vadd.f32 0.0, %v1065
  %v1067 = vpop.f32.mrb[0].mxu0
  %1068 = vdwg.mxu0
  %1069 = vst.msk [vmem:[#allocation2] sm:$0xff] %vm145, %v1051
  %1070 = vst.msk [vmem:[#allocation2 + $0x8] sm:$0xff] %vm145, %v1056
  %1073 = vrot.lane.b32.xlu0 %v1061, 64
  %v1074 = vpop.permute.xlu0 %1073
  %1075 = vrot.lane.b32.xlu0 %v1066, 64
  %v1076 = vpop.permute.xlu0 %1075
  %vm1079 = vcmask 1048064
  %1080 = vst.msk [vmem:[#allocation2] sm:$0xff] %vm1079, %v1074
  %1081 = vst.msk [vmem:[#allocation2 + $0x8] sm:$0xff] %vm1079, %v1076
  %v1082 = vld [vmem:[#allocation2] sm:$0xff]
  %v1083 = vld [vmem:[#allocation2 + $0x8] sm:$0xff]
  %v1084 = vld [vmem:[%s3 + $0xc0] sm:$0x3]
  %v1085 = vlaneseq
  %v1086 = vshrl.u32 %v1085, 7
  %v1087 = vsub.s32 0, %v1086
  %v1088 = vrot.slane %v1084, %v1087
  %1089 = vmatprep.subr.mxu0 0.0
  %1090 = vmatpush1.msra.mxu0 %v968
  %1091 = vmatprep.subr.mxu0 0.0
  %1092 = vmatpush1.msra.mxu0 %v969
  %1093 = vmatprep.subr.mxu0 0.0
  %1094 = vmatpush1.msra.mxu0 %v970
  %1095 = vmatprep.subr.mxu0 0.0
  %1096 = vmatpush1.msra.mxu0 %v971
  %1097 = vmatprep.subr.mxu0 0.0
  %1098 = vmatpush1.msra.mxu0 %v972
  %1099 = vmatprep.subr.mxu0 0.0
  %1100 = vmatpush1.msra.mxu0 %v973
  %1101 = vmatprep.subr.mxu0 0.0
  %1102 = vmatpush1.msra.mxu0 %v974
  %1103 = vmatprep.subr.mxu0 0.0
  %1104 = vmatpush1.msra.mxu0 %v975
  %1105 = vmatprep.subr.mxu0 0.0
  %1106 = vmatpush1.msra.mxu0 %v976
  %1107 = vmatprep.subr.mxu0 0.0
  %1108 = vmatpush1.msra.mxu0 %v977
  %1109 = vmatprep.subr.mxu0 0.0
  %1110 = vmatpush1.msra.mxu0 %v978
  %1111 = vmatprep.subr.mxu0 0.0
  %1112 = vmatpush1.msra.mxu0 %v979
  %1113 = vmatprep.subr.mxu0 0.0
  %1114 = vmatpush1.msra.mxu0 %v980
  %1115 = vmatprep.subr.mxu0 0.0
  %1116 = vmatpush1.msra.mxu0 %v981
  %1117 = vmatprep.subr.mxu0 0.0
  %1118 = vmatpush1.msra.mxu0 %v982
  %1119 = vmatprep.subr.mxu0 0.0
  %1120 = vmatpush1.msra.mxu0 %v983
  %1121 = vmatprep.subr.mxu0 0.0
  %1122 = vmatpush1.msra.mxu0 0.0
  %1123 = vmatprep.subr.mxu0 0.0
  %1124 = vmatpush1.msra.mxu0 0.0
  %1125 = vmatprep.subr.mxu0 0.0
  %1126 = vmatpush1.msra.mxu0 0.0
  %1127 = vmatprep.subr.mxu0 0.0
  %1128 = vmatpush1.msra.mxu0 0.0
  %1129 = vmatprep.subr.mxu0 0.0
  %1130 = vmatpush1.msra.mxu0 0.0
  %1131 = vmatprep.subr.mxu0 0.0
  %1132 = vmatpush1.msra.mxu0 0.0
  %1133 = vmatprep.subr.mxu0 0.0
  %1134 = vmatpush1.msra.mxu0 0.0
  %1135 = vmatprep.subr.mxu0 0.0
  %1136 = vmatpush1.msra.mxu0 0.0
  %1137 = vmatprep.subr.mxu0 0.0
  %1138 = vmatpush1.msra.mxu0 0.0
  %1139 = vmatprep.subr.mxu0 0.0
  %1140 = vmatpush1.msra.mxu0 0.0
  %1141 = vmatprep.subr.mxu0 0.0
  %1142 = vmatpush1.msra.mxu0 0.0
  %1143 = vmatprep.subr.mxu0 0.0
  %1144 = vmatpush1.msra.mxu0 0.0
  %1145 = vmatprep.subr.mxu0 0.0
  %1146 = vmatpush1.msra.mxu0 0.0
  %1147 = vmatprep.subr.mxu0 0.0
  %1148 = vmatpush1.msra.mxu0 0.0
  %1149 = vmatprep.subr.mxu0 0.0
  %1150 = vmatpush1.msra.mxu0 0.0
  %1151 = vmatprep.subr.mxu0 0.0
  %1152 = vmatpush1.msra.mxu0 0.0
  %1153 = vmatprep.mubr.f32.mxu0 0.0
  %1154 = vmatmul.mubr.f32.gmra.mrb[0].mxu0 %v1082
  %v1155 = vpop.f32.mrb[0].mxu0
  %v1156 = vadd.f32 %v1088, %v1155
  %v1157 = vpop.f32.mrb[0].mxu0
  %1158 = vmatprep.mubr.f32.mxu0 0.0
  %1159 = vmatmul.mubr.f32.gmra.mrb[0].mxu0 %v1083
  %v1160 = vpop.f32.mrb[0].mxu0
  %v1161 = vadd.f32 %v1088, %v1160
  %v1162 = vpop.f32.mrb[0].mxu0
  %1163 = vdwg.mxu0
  %v1164 = vmax.f32 %v1156, 0.0
  %v1165 = vmax.f32 %v1161, 0.0
  %v1166 = vld [vmem:[%s3 + $0x80] sm:$0xff]
  %v1167 = vld [vmem:[%s3 + $0x88] sm:$0xff]
  %v1168 = vld [vmem:[%s3 + $0x90] sm:$0xff]
  %v1169 = vld [vmem:[%s3 + $0x98] sm:$0xff]
  %v1170 = vld [vmem:[%s3 + $0xa0] sm:$0xff]
  %v1171 = vld [vmem:[%s3 + $0xa8] sm:$0xff]
  %v1172 = vld [vmem:[%s3 + $0xb0] sm:$0xff]
  %v1173 = vld [vmem:[%s3 + $0xb8] sm:$0xff]
  %v1174 = vlaneseq
  %v1175 = vshrl.u32 %v1174, 7
  %v1176 = vsub.s32 1, %v1175
  %v1177 = vrot.slane %v1084, %v1176
  %v1179 = vsel %vm145, %v1164, 0
  %v1182 = vsel %vm145, %v1165, 0
  %1184 = vmatprep.subr.mxu0 0.0
  %1185 = vmatpush1.msra.mxu0 %v1166
  %1186 = vmatprep.subr.mxu0 0.0
  %1187 = vmatpush1.msra.mxu0 %v1167
  %1188 = vmatprep.subr.mxu0 0.0
  %1189 = vmatpush1.msra.mxu0 %v1168
  %1190 = vmatprep.subr.mxu0 0.0
  %1191 = vmatpush1.msra.mxu0 %v1169
  %1192 = vmatprep.subr.mxu0 0.0
  %1193 = vmatpush1.msra.mxu0 %v1170
  %1194 = vmatprep.subr.mxu0 0.0
  %1195 = vmatpush1.msra.mxu0 %v1171
  %1196 = vmatprep.subr.mxu0 0.0
  %1197 = vmatpush1.msra.mxu0 %v1172
  %1198 = vmatprep.subr.mxu0 0.0
  %1199 = vmatpush1.msra.mxu0 %v1173
  %1200 = vmatprep.subr.mxu0 0.0
  %1201 = vmatpush1.msra.mxu0 0.0
  %1202 = vmatprep.subr.mxu0 0.0
  %1203 = vmatpush1.msra.mxu0 0.0
  %1204 = vmatprep.subr.mxu0 0.0
  %1205 = vmatpush1.msra.mxu0 0.0
  %1206 = vmatprep.subr.mxu0 0.0
  %1207 = vmatpush1.msra.mxu0 0.0
  %1208 = vmatprep.subr.mxu0 0.0
  %1209 = vmatpush1.msra.mxu0 0.0
  %1210 = vmatprep.subr.mxu0 0.0
  %1211 = vmatpush1.msra.mxu0 0.0
  %1212 = vmatprep.subr.mxu0 0.0
  %1213 = vmatpush1.msra.mxu0 0.0
  %1214 = vmatprep.subr.mxu0 0.0
  %1215 = vmatpush1.msra.mxu0 0.0
  %1216 = vmatprep.subr.mxu0 0.0
  %1217 = vmatpush1.msra.mxu0 0.0
  %1218 = vmatprep.subr.mxu0 0.0
  %1219 = vmatpush1.msra.mxu0 0.0
  %1220 = vmatprep.subr.mxu0 0.0
  %1221 = vmatpush1.msra.mxu0 0.0
  %1222 = vmatprep.subr.mxu0 0.0
  %1223 = vmatpush1.msra.mxu0 0.0
  %1224 = vmatprep.subr.mxu0 0.0
  %1225 = vmatpush1.msra.mxu0 0.0
  %1226 = vmatprep.subr.mxu0 0.0
  %1227 = vmatpush1.msra.mxu0 0.0
  %1228 = vmatprep.subr.mxu0 0.0
  %1229 = vmatpush1.msra.mxu0 0.0
  %1230 = vmatprep.subr.mxu0 0.0
  %1231 = vmatpush1.msra.mxu0 0.0
  %1232 = vmatprep.subr.mxu0 0.0
  %1233 = vmatpush1.msra.mxu0 0.0
  %1234 = vmatprep.subr.mxu0 0.0
  %1235 = vmatpush1.msra.mxu0 0.0
  %1236 = vmatprep.subr.mxu0 0.0
  %1237 = vmatpush1.msra.mxu0 0.0
  %1238 = vmatprep.subr.mxu0 0.0
  %1239 = vmatpush1.msra.mxu0 0.0
  %1240 = vmatprep.subr.mxu0 0.0
  %1241 = vmatpush1.msra.mxu0 0.0
  %1242 = vmatprep.subr.mxu0 0.0
  %1243 = vmatpush1.msra.mxu0 0.0
  %1244 = vmatprep.subr.mxu0 0.0
  %1245 = vmatpush1.msra.mxu0 0.0
  %1246 = vmatprep.subr.mxu0 0.0
  %1247 = vmatpush1.msra.mxu0 0.0
  %1248 = vmatprep.mubr.f32.mxu0 0.0
  %1249 = vmatmul.mubr.f32.gmra.mrb[0].mxu0 %v1179
  %v1250 = vpop.f32.mrb[0].mxu0
  %v1251 = vadd.f32 %v1177, %v1250
  %v1252 = vpop.f32.mrb[0].mxu0
  %1253 = vmatprep.mubr.f32.mxu0 0.0
  %1254 = vmatmul.mubr.f32.gmra.mrb[0].mxu0 %v1182
  %v1255 = vpop.f32.mrb[0].mxu0
  %v1256 = vadd.f32 %v1177, %v1255
  %v1257 = vpop.f32.mrb[0].mxu0
  %1258 = vdwg.mxu0
  %1259 = vst.msk [vmem:[%s4] sm:$0xff] %vm145, %v1251
  %1260 = vst.msk [vmem:[%s4 + $0x8] sm:$0xff] %vm145, %v1256
  // Predicated region
  $region18: #{neural_block.1} parent=0 // pred_check
    _
  $region19: #{neural_block.1} parent=0 // pred_check_branch
    %1262 = sbr.rel (0) target = $region21
  $region20: #{neural_block.1} parent=0 // pred_region
    _
  $region21: #{neural_block.1} parent=0 // pred_fallthru
    _
  // Predicated region
  $region22: #{neural_block.1} parent=0 // pred_check
    _
  $region23: #{neural_block.1} parent=0 // pred_check_branch
    %1264 = sbr.rel (0) target = $region25
  $region24: #{neural_block.1} parent=0 // pred_region
    _
  $region25: #{neural_block.1} parent=0 // pred_fallthru
    _

</llo_original>
